<compile_context>
chip_gen: v6e
topology: v6e:2x2x1
jax: 0.10.0
libtpu: 0.0.40
codegen_flags: <defaults>
</compile_context>

<pallas_src>
import functools
import math

import jax
import jax.numpy as jnp
from jax.experimental import pallas as pl
from jax.experimental.pallas import tpu as pltpu


def find_multiple(n: int, k: int) -> int:
    if n % k == 0:
        return n
    return n + k - n % k


# ---------------------------------------------------------------------------
# Hardware-dependent tiling configuration
# ---------------------------------------------------------------------------
def _hw_config():
    """Pick tile caps / VMEM budget by TPU generation (v7x has only 64 MiB/TC)."""
    vmem_cap = None
    try:
        info = pltpu.get_tpu_info()
        vmem_cap = getattr(info, "vmem_capacity_bytes", None)
    except Exception:
        vmem_cap = None
    kind = ""
    try:
        kind = jax.devices()[0].device_kind.lower()
    except Exception:
        pass
    if vmem_cap is None:
        if any(tag in kind for tag in ("v4", "v5", "v6")):
            vmem_cap = 128 * 1024 * 1024
        else:
            vmem_cap = 64 * 1024 * 1024          # conservative (v7x-like)
    if vmem_cap >= 100 * 1024 * 1024:            # v4 / v5e / v5p / v6e: 128 MiB VMEM
        cfg = dict(ts=512, tn=512, th=1024, tq=256, tk=256,
                   vmem=96 * 1024 * 1024)
    else:                                        # v7x: 64 MiB per TensorCore
        cfg = dict(ts=256, tn=512, th=512, tq=256, tk=256,
                   vmem=44 * 1024 * 1024)
    if "v5 lite" in kind or "v5e" in kind:       # 128-wide MXU: 128 tiles suffice
        cfg["tq"] = cfg["tk"] = 128
    return cfg


def _pick_tile(n, cap, align):
    """Largest divisor of n that is <= cap and a multiple of `align`, else n."""
    best = None
    upper = min(cap, n)
    for t in range(align, upper + 1, align):
        if n % t == 0:
            best = t
    return best if best is not None else n


def _pick_row_tile(S, B, cap):
    """Row tile over the flattened (B*S, D) token axis.

    Either divides S (tile never straddles a sequence) or is a multiple of S
    that divides B*S (tile covers whole sequences), so the position-embedding
    block mapping stays expressible.  Must be a multiple of 8 (sublane) unless
    it equals the full row count.
    """
    T = B * S
    cands = [d for d in range(8, min(S, cap) + 1, 8) if S % d == 0]
    cands += [S * m for m in range(1, B + 1)
              if B % m == 0 and S * m <= cap and ((S * m) % 8 == 0 or S * m == T)]
    if not cands:
        return T
    return max(cands)


# ---------------------------------------------------------------------------
# Kernel 1: RMSNorm(x)*gamma + pos_emb, then fused QKV projection (bf16 MXU)
#   Grid = (N//tn, T//ts) with the weight axis OUTERMOST (weight tile resident
#   across the token sweep).  The norm recompute per n-pass is VPU/EUP work
#   that hides under the MXU matmul.
# ---------------------------------------------------------------------------
def _norm_pos_qkv_kernel(x_ref, g_ref, pos_ref, w_ref, o_ref, *, eps):
    x = x_ref[...].astype(jnp.float32)                               # (ts, D)
    inv = jax.lax.rsqrt(jnp.mean(x * x, axis=-1, keepdims=True) + eps)
    h = (x * inv) * g_ref[...] + pos_ref[...].astype(jnp.float32)
    o_ref[...] = jnp.dot(h.astype(jnp.bfloat16), w_ref[...],
                         preferred_element_type=jnp.float32).astype(o_ref.dtype)


def _norm_pos_qkv(x_flat, gamma, pos_arr, w_t, *, eps, ts, tn, pos_blocks, vmem):
    T, D = x_flat.shape
    N = w_t.shape[1]
    kernel = functools.partial(_norm_pos_qkv_kernel, eps=eps)
    return pl.pallas_call(
        kernel,
        out_shape=jax.ShapeDtypeStruct((T, N), jnp.bfloat16),
        grid_spec=pltpu.PrefetchScalarGridSpec(
            num_scalar_prefetch=0,
            grid=(N // tn, T // ts),
            in_specs=[
                pl.BlockSpec((ts, D), lambda n, t: (t, 0)),              # x rows
                pl.BlockSpec((1, D), lambda n, t: (0, 0)),               # gamma
                pl.BlockSpec((ts, D), lambda n, t: (t % pos_blocks, 0)),  # pos emb
                pl.BlockSpec((D, tn), lambda n, t: (0, n)),              # Wqkv^T
            ],
            out_specs=pl.BlockSpec((ts, tn), lambda n, t: (t, n)),
        ),
        compiler_params=pltpu.CompilerParams(
            dimension_semantics=("parallel", "arbitrary"),
            vmem_limit_bytes=vmem),
    )(x_flat, gamma, pos_arr, w_t)


# ---------------------------------------------------------------------------
# Kernel 2a: flash-style causal attention reading straight from the fused qkv
# tensor, one KV group (rep query heads) per invocation, output in (B,S,D).
# Requires head_dim % 128 == 0 (true for production hd=128 and the test).
# ---------------------------------------------------------------------------
def _flash_group_kernel(q_ref, k_ref, v_ref, o_ref, m_sc, l_sc, acc_sc,
                        *, rep, hd, tq, tk):
    i = pl.program_id(2)
    j = pl.program_id(3)

    @pl.when(j == 0)
    def _():
        m_sc[...] = jnp.full_like(m_sc, -1e30)
        l_sc[...] = jnp.zeros_like(l_sc)
        acc_sc[...] = jnp.zeros_like(acc_sc)

    q_start = i * tq
    q_end = q_start + tq - 1
    k_start = j * tk
    k_end = k_start + tk - 1

    def process(masked):
        k = k_ref[0]                                                 # (tk, hd)
        v = v_ref[0]                                                 # (tk, hd)
        qg = q_ref[0]                                                # (tq, rep*hd)
        if masked:
            row = q_start + jax.lax.broadcasted_iota(jnp.int32, (tq, tk), 0)
            col = k_start + jax.lax.broadcasted_iota(jnp.int32, (tq, tk), 1)
            keep = col <= row
        for h in range(rep):
            q = qg[:, h * hd:(h + 1) * hd]                           # lane-aligned
            s = jax.lax.dot_general(q, k, (((1,), (1,)), ((), ())),
                                    preferred_element_type=jnp.float32)
            if masked:
                s = jnp.where(keep, s, -1e30)
            m_prev = m_sc[h]
            m_new = jnp.maximum(m_prev, jnp.max(s, axis=-1, keepdims=True))
            alpha = jnp.exp(m_prev - m_new)
            p = jnp.exp(s - m_new)
            l_sc[h] = alpha * l_sc[h] + jnp.sum(p, axis=-1, keepdims=True)
            acc_sc[h] = alpha * acc_sc[h] + jnp.dot(
                p.astype(jnp.bfloat16), v, preferred_element_type=jnp.float32)
            m_sc[h] = m_new

    # Interior (fully-unmasked) KV tiles: no causal-mask VALU work.
    @pl.when(k_end <= q_start)
    def _():
        process(False)

    # Diagonal-straddling tiles: apply the causal mask.
    @pl.when(jnp.logical_and(k_end > q_start, k_start <= q_end))
    def _():
        process(True)

    # Fully-masked tiles (k_start > q_end) compute nothing; their K/V
    # index_map is clamped so no new DMA is issued either.

    @pl.when(j == pl.num_programs(3) - 1)
    def _():
        outs = [(acc_sc[h] * pl.reciprocal(l_sc[h], approx=True)).astype(o_ref.dtype)
                for h in range(rep)]
        o_ref[0] = jnp.concatenate(outs, axis=-1)


def _flash_attention_grouped(qkv, *, D, hd, Hq, Hkv, tq, tk, vmem):
    B, S, _ = qkv.shape
    rep = Hq // Hkv
    kernel = functools.partial(_flash_group_kernel, rep=rep, hd=hd, tq=tq, tk=tk)

    def last_kv_block(i):
        return (i * tq + tq - 1) // tk

    q_spec = pl.BlockSpec((1, tq, rep * hd), lambda b, g, i, j: (b, i, g))
    k_spec = pl.BlockSpec(
        (1, tk, hd),
        lambda b, g, i, j: (b, jnp.minimum(j, last_kv_block(i)), Hq + g))
    v_spec = pl.BlockSpec(
        (1, tk, hd),
        lambda b, g, i, j: (b, jnp.minimum(j, last_kv_block(i)), Hq + Hkv + g))
    o_spec = pl.BlockSpec((1, tq, rep * hd), lambda b, g, i, j: (b, i, g))

    return pl.pallas_call(
        kernel,
        out_shape=jax.ShapeDtypeStruct((B, S, D), jnp.bfloat16),
        grid_spec=pltpu.PrefetchScalarGridSpec(
            num_scalar_prefetch=0,
            grid=(B, Hkv, S // tq, S // tk),
            in_specs=[q_spec, k_spec, v_spec],
            out_specs=o_spec,
            scratch_shapes=[
                pltpu.VMEM((rep, tq, 1), jnp.float32),    # running max / head
                pltpu.VMEM((rep, tq, 1), jnp.float32),    # running denom / head
                pltpu.VMEM((rep, tq, hd), jnp.float32),   # output accumulators
            ],
        ),
        compiler_params=pltpu.CompilerParams(
            dimension_semantics=("parallel", "parallel", "parallel", "arbitrary"),
            vmem_limit_bytes=vmem),
    )(qkv, qkv, qkv)


# ---------------------------------------------------------------------------
# Kernel 2b: fallback per-head flash attention for head_dim % 128 != 0
# (explicit (B,H,S,hd) layout done by XLA in the wrapper).
# ---------------------------------------------------------------------------
def _flash_head_kernel(q_ref, k_ref, v_ref, o_ref, m_sc, l_sc, acc_sc, *, tq, tk):
    i = pl.program_id(2)
    j = pl.program_id(3)

    @pl.when(j == 0)
    def _():
        m_sc[...] = jnp.full_like(m_sc, -1e30)
        l_sc[...] = jnp.zeros_like(l_sc)
        acc_sc[...] = jnp.zeros_like(acc_sc)

    q_start = i * tq
    q_end = q_start + tq - 1
    k_start = j * tk
    k_end = k_start + tk - 1

    def process(masked):
        q = q_ref[0, 0]
        k = k_ref[0, 0]
        s = jax.lax.dot_general(q, k, (((1,), (1,)), ((), ())),
                                preferred_element_type=jnp.float32)
        if masked:
            row = q_start + jax.lax.broadcasted_iota(jnp.int32, (tq, tk), 0)
            col = k_start + jax.lax.broadcasted_iota(jnp.int32, (tq, tk), 1)
            s = jnp.where(col <= row, s, -1e30)
        m_new = jnp.maximum(m_sc[...], jnp.max(s, axis=-1, keepdims=True))
        alpha = jnp.exp(m_sc[...] - m_new)
        p = jnp.exp(s - m_new)
        l_sc[...] = alpha * l_sc[...] + jnp.sum(p, axis=-1, keepdims=True)
        acc_sc[...] = alpha * acc_sc[...] + jnp.dot(
            p.astype(jnp.bfloat16), v_ref[0, 0], preferred_element_type=jnp.float32)
        m_sc[...] = m_new

    @pl.when(k_end <= q_start)
    def _():
        process(False)

    @pl.when(jnp.logical_and(k_end > q_start, k_start <= q_end))
    def _():
        process(True)

    @pl.when(j == pl.num_programs(3) - 1)
    def _():
        o_ref[0, 0] = (acc_sc[...] *
                       pl.reciprocal(l_sc[...], approx=True)).astype(o_ref.dtype)


def _flash_attention_heads(q, k, v, *, tq, tk, vmem):
    B, H, S, hd = q.shape
    Hkv = k.shape[1]
    rep = H // Hkv
    kernel = functools.partial(_flash_head_kernel, tq=tq, tk=tk)

    def last_kv_block(i):
        return (i * tq + tq - 1) // tk

    return pl.pallas_call(
        kernel,
        out_shape=jax.ShapeDtypeStruct((B, H, S, hd), jnp.bfloat16),
        grid_spec=pltpu.PrefetchScalarGridSpec(
            num_scalar_prefetch=0,
            grid=(B, H, S // tq, S // tk),
            in_specs=[
                pl.BlockSpec((1, 1, tq, hd), lambda b, h, i, j: (b, h, i, 0)),
                pl.BlockSpec((1, 1, tk, hd),
                             lambda b, h, i, j: (b, h // rep,
                                                 jnp.minimum(j, last_kv_block(i)), 0)),
                pl.BlockSpec((1, 1, tk, hd),
                             lambda b, h, i, j: (b, h // rep,
                                                 jnp.minimum(j, last_kv_block(i)), 0)),
            ],
            out_specs=pl.BlockSpec((1, 1, tq, hd), lambda b, h, i, j: (b, h, i, 0)),
            scratch_shapes=[
                pltpu.VMEM((tq, 1), jnp.float32),
                pltpu.VMEM((tq, 1), jnp.float32),
                pltpu.VMEM((tq, hd), jnp.float32),
            ],
        ),
        compiler_params=pltpu.CompilerParams(
            dimension_semantics=("parallel", "parallel", "parallel", "arbitrary"),
            vmem_limit_bytes=vmem),
    )(q, k, v)


# ---------------------------------------------------------------------------
# Kernel 3: output projection + first residual (weight axis outermost)
# ---------------------------------------------------------------------------
def _proj_residual_kernel(a_ref, w_ref, r_ref, o_ref):
    o = jnp.dot(a_ref[...], w_ref[...], preferred_element_type=jnp.float32)
    o_ref[...] = (r_ref[...].astype(jnp.float32) + o).astype(o_ref.dtype)


def _proj_residual(a_flat, w_t, r_flat, *, ts, tn, vmem):
    T, D = a_flat.shape
    N = w_t.shape[1]
    return pl.pallas_call(
        _proj_residual_kernel,
        out_shape=jax.ShapeDtypeStruct((T, N), jnp.bfloat16),
        grid_spec=pltpu.PrefetchScalarGridSpec(
            num_scalar_prefetch=0,
            grid=(N // tn, T // ts),
            in_specs=[
                pl.BlockSpec((ts, D), lambda n, t: (t, 0)),      # attn output rows
                pl.BlockSpec((D, tn), lambda n, t: (0, n)),      # Wo^T tile (resident)
                pl.BlockSpec((ts, tn), lambda n, t: (t, n)),     # residual x
            ],
            out_specs=pl.BlockSpec((ts, tn), lambda n, t: (t, n)),
        ),
        compiler_params=pltpu.CompilerParams(
            dimension_semantics=("parallel", "arbitrary"),
            vmem_limit_bytes=vmem),
    )(a_flat, w_t, r_flat)


# ---------------------------------------------------------------------------
# Kernel 4: RMSNorm + SwiGLU FFN (hidden-dim tiled) + second residual
# ---------------------------------------------------------------------------
def _ffn_kernel(h_ref, g_ref, w1_ref, w3_ref, w2_ref, o_ref, acc_sc, nh_sc, *, eps):
    j = pl.program_id(1)

    @pl.when(j == 0)
    def _():
        h = h_ref[...].astype(jnp.float32)                           # (ts, D)
        inv = jax.lax.rsqrt(jnp.mean(h * h, axis=-1, keepdims=True) + eps)
        nh_sc[...] = ((h * inv) * g_ref[...]).astype(jnp.bfloat16)   # cached norm
        acc_sc[...] = h                                              # residual preload

    nh = nh_sc[...]                                                  # (ts, D) bf16
    u = jnp.dot(nh, w1_ref[...], preferred_element_type=jnp.float32)
    g = jnp.dot(nh, w3_ref[...], preferred_element_type=jnp.float32)
    a = (u * jax.nn.sigmoid(u) * g).astype(jnp.bfloat16)             # silu(u) * g
    acc_sc[...] += jnp.dot(a, w2_ref[...], preferred_element_type=jnp.float32)

    @pl.when(j == pl.num_programs(1) - 1)
    def _():
        o_ref[...] = acc_sc[...].astype(o_ref.dtype)


def _ffn_residual(h_flat, gamma, w1_t, w3_t, w2_t, *, eps, ts, th, vmem, out_dtype):
    T, D = h_flat.shape
    Hdim = w1_t.shape[1]
    kernel = functools.partial(_ffn_kernel, eps=eps)
    return pl.pallas_call(
        kernel,
        out_shape=jax.ShapeDtypeStruct((T, D), out_dtype),
        grid_spec=pltpu.PrefetchScalarGridSpec(
            num_scalar_prefetch=0,
            grid=(T // ts, Hdim // th),
            in_specs=[
                pl.BlockSpec((ts, D), lambda t, j: (t, 0)),    # h (residual + norm in)
                pl.BlockSpec((1, D), lambda t, j: (0, 0)),     # gamma
                pl.BlockSpec((D, th), lambda t, j: (0, j)),    # W1^T tile
                pl.BlockSpec((D, th), lambda t, j: (0, j)),    # W3^T tile
                pl.BlockSpec((th, D), lambda t, j: (j, 0)),    # W2^T tile
            ],
            out_specs=pl.BlockSpec((ts, D), lambda t, j: (t, 0)),
            scratch_shapes=[
                pltpu.VMEM((ts, D), jnp.float32),      # residual + FFN accumulator
                pltpu.VMEM((ts, D), jnp.bfloat16),     # cached RMSNorm(h)
            ],
        ),
        compiler_params=pltpu.CompilerParams(
            dimension_semantics=("parallel", "arbitrary"),
            vmem_limit_bytes=vmem),
    )(h_flat, gamma, w1_t, w3_t, w2_t)


# ---------------------------------------------------------------------------
# Full TransformerBlock forward
# ---------------------------------------------------------------------------
def transformer_block_forward(x, params, *, n_head, n_kv_head, norm_eps=1e-5):
    B, S, D = x.shape
    hd = D // n_head
    Hkv = n_kv_head
    kv_dim = Hkv * hd
    N = (n_head + 2 * Hkv) * hd
    T = B * S

    cfg = _hw_config()

    # ---- one-time layout / dtype plumbing (outside the kernels) ----
    scale = 1.0 / math.sqrt(hd)
    wqkv_t = params["wqkv"].T                                        # (D, N)
    wqkv_t = jnp.concatenate([wqkv_t[:, :D] * scale, wqkv_t[:, D:]],
                             axis=1).astype(jnp.bfloat16)            # fold 1/sqrt(hd)
    wo_t = params["wo"].T.astype(jnp.bfloat16)
    w1_t = params["w1"].T.astype(jnp.bfloat16)
    w3_t = params["w3"].T.astype(jnp.bfloat16)
    w2_t = params["w2"].T.astype(jnp.bfloat16)
    attn_g = params["attn_norm"].reshape(1, D).astype(jnp.float32)
    ffn_g = params["ffn_norm"].reshape(1, D).astype(jnp.float32)
    pos = params["pos_table"][:S].astype(jnp.bfloat16)               # (S, D)

    x_flat = x.astype(jnp.bfloat16).reshape(T, D)                    # bf16 residual path

    # ---- tile selection (respecting (8,128) constraints) ----
    ts = _pick_row_tile(S, B, cfg["ts"])
    tq = _pick_tile(S, cfg["tq"], 8)
    tk = _pick_tile(S, cfg["tk"], 8)
    tn_qkv = _pick_tile(N, cfg["tn"], 128)
    tn_o = _pick_tile(D, cfg["tn"], 128)
    th = _pick_tile(w1_t.shape[1], cfg["th"], 128)

    if ts <= S:
        pos_arr, pos_blocks = pos, S // ts
    else:
        pos_arr, pos_blocks = jnp.tile(pos, (ts // S, 1)), 1

    # 1) attention_norm + positional embedding + fused QKV projection
    qkv = _norm_pos_qkv(x_flat, attn_g, pos_arr, wqkv_t, eps=norm_eps,
                        ts=ts, tn=tn_qkv, pos_blocks=pos_blocks, vmem=cfg["vmem"])
    qkv = qkv.reshape(B, S, N)

    # 2) flash attention straight from the fused qkv tensor (no XLA transposes)
    if hd % 128 == 0:
        attn = _flash_attention_grouped(qkv, D=D, hd=hd, Hq=n_head, Hkv=Hkv,
                                        tq=tq, tk=tk, vmem=cfg["vmem"])
    else:
        # Fallback for head_dim < 128: explicit (B,H,S,hd) layout in XLA.
        q = qkv[..., :D].reshape(B, S, n_head, hd).transpose(0, 2, 1, 3)
        k = qkv[..., D:D + kv_dim].reshape(B, S, Hkv, hd).transpose(0, 2, 1, 3)
        v = qkv[..., D + kv_dim:].reshape(B, S, Hkv, hd).transpose(0, 2, 1, 3)
        attn4 = _flash_attention_heads(q, k, v, tq=tq, tk=tk, vmem=cfg["vmem"])
        attn = attn4.transpose(0, 2, 1, 3).reshape(B, S, D)

    # 3) output projection + first residual (h carried in bf16 between kernels)
    h_flat = _proj_residual(attn.reshape(T, D), wo_t, x_flat,
                            ts=ts, tn=tn_o, vmem=cfg["vmem"])

    # 4) ffn_norm + SwiGLU FFN + second residual (f32 accumulator / output)
    out = _ffn_residual(h_flat, ffn_g, w1_t, w3_t, w2_t, eps=norm_eps,
                        ts=ts, th=th, vmem=cfg["vmem"], out_dtype=jnp.float32)
    return out.reshape(B, S, D).astype(x.dtype)


# ---------------------------------------------------------------------------
# Pure-JAX fp32 reference (mirrors the PyTorch forward, eval mode)
# ---------------------------------------------------------------------------
def transformer_block_reference(x, params, *, n_head, n_kv_head, norm_eps=1e-5):
    B, S, D = x.shape
    hd = D // n_head
    kv_dim = n_kv_head * hd

    def rmsnorm(v, w):
        return v * jax.lax.rsqrt(jnp.mean(v * v, -1, keepdims=True) + norm_eps) * w

    xin = rmsnorm(x, params["attn_norm"]) + params["pos_table"][:S][None]
    qkv = xin @ params["wqkv"].T
    q, k, v = jnp.split(qkv, [D, D + kv_dim], axis=-1)
    q = q.reshape(B, S, n_head, hd).transpose(0, 2, 1, 3)
    k = k.reshape(B, S, n_kv_head, hd).transpose(0, 2, 1, 3)
    v = v.reshape(B, S, n_kv_head, hd).transpose(0, 2, 1, 3)
    rep = n_head // n_kv_head
    k = jnp.repeat(k, rep, axis=1)
    v = jnp.repeat(v, rep, axis=1)
    s = jnp.einsum("bhqd,bhkd->bhqk", q, k) / math.sqrt(hd)
    mask = jnp.tril(jnp.ones((S, S), dtype=bool))
    s = jnp.where(mask, s, -jnp.inf)
    p = jax.nn.softmax(s, axis=-1)
    o = jnp.einsum("bhqk,bhkd->bhqd", p, v)
    o = o.transpose(0, 2, 1, 3).reshape(B, S, D)
    h = x + o @ params["wo"].T
    f = rmsnorm(h, params["ffn_norm"])
    ff = (jax.nn.silu(f @ params["w1"].T) * (f @ params["w3"].T)) @ params["w2"].T
    return h + ff


if __name__ == "__main__":
    # Small config consistent with ModelArgs semantics (dim % n_head == 0, GQA,
    # hidden = find_multiple(4*dim, multiple_of)) with head_dim = 128 so the
    # direct-from-qkv attention layout path (the production layout) is exercised.
    B, S = 2, 128
    dim = 256
    n_head = 2
    n_kv_head = 1
    multiple_of = 64
    hidden = find_multiple(4 * dim, multiple_of)            # 1024
    head_dim = dim // n_head                                # 128
    total_kv = (n_head + 2 * n_kv_head) * head_dim          # 512
    vocab_size = 256
    init_range = 0.02
    eps = 1e-5

    key = jax.random.PRNGKey(0)
    ks = jax.random.split(key, 9)
    x = jax.random.normal(ks[0], (B, S, dim), dtype=jnp.float32)
    params = {
        "pos_table": init_range * jax.random.normal(ks[1], (vocab_size, dim), jnp.float32),
        "wqkv": init_range * jax.random.normal(ks[2], (total_kv, dim), jnp.float32),
        "wo": init_range * jax.random.normal(ks[3], (dim, dim), jnp.float32),
        "w1": init_range * jax.random.normal(ks[4], (hidden, dim), jnp.float32),
        "w3": init_range * jax.random.normal(ks[5], (hidden, dim), jnp.float32),
        "w2": init_range * jax.random.normal(ks[6], (dim, hidden), jnp.float32),
        "attn_norm": 1.0 + 0.1 * jax.random.normal(ks[7], (dim,), jnp.float32),
        "ffn_norm": 1.0 + 0.1 * jax.random.normal(ks[8], (dim,), jnp.float32),
    }

    out = transformer_block_forward(x, params, n_head=n_head,
                                    n_kv_head=n_kv_head, norm_eps=eps)
    out = jax.block_until_ready(out)

    ref = transformer_block_reference(x, params, n_head=n_head,
                                      n_kv_head=n_kv_head, norm_eps=eps)
    assert out.shape == (B, S, dim)
    max_err = float(jnp.max(jnp.abs(out - ref)))
    # bf16 MXU operands / bf16 residual path + f32 accumulation -> loose tolerance
    assert jnp.allclose(out, ref, atol=2e-2, rtol=2e-2), \
        f"mismatch vs reference (max abs err {max_err})"

    print("KERNEL_OK")
</pallas_src>

<mosaic_0001>
module attributes {stable_mosaic.version = 11 : i64} {
  func.func @_norm_pos_qkv_kernel(%arg0: i32, %arg1: i32, %arg2: memref<256x256xbf16, #tpu.memory_space<vmem>>, %arg3: memref<1x256xf32, #tpu.memory_space<vmem>>, %arg4: memref<256x256xbf16, #tpu.memory_space<vmem>>, %arg5: memref<256x512xbf16, #tpu.memory_space<vmem>>, %arg6: memref<256x512xbf16, #tpu.memory_space<vmem>>) attributes {dimension_semantics = [#tpu.dimension_semantics<parallel>, #tpu.dimension_semantics<arbitrary>], iteration_bounds = array<i64: 1, 1>, scalar_prefetch = 0 : i64, scratch_operands = 0 : i64, tpu.core_type = #tpu.core_type<tc>, window_params = [{transform_indices = @transform_0, window_bounds = array<i64: 256, 256>}, {pipeline_mode = #tpu.pipeline_mode<synchronous>, transform_indices = @transform_1, window_bounds = array<i64: 1, 256>}, {transform_indices = @transform_2, window_bounds = array<i64: 256, 256>}, {transform_indices = @transform_3, window_bounds = array<i64: 256, 512>}, {transform_indices = @transform_4, window_bounds = array<i64: 256, 512>}]} {
    %c0 = arith.constant 0 : index
    %c0_0 = arith.constant 0 : index
    %0 = vector.load %arg2[%c0, %c0_0] : memref<256x256xbf16, #tpu.memory_space<vmem>>, vector<256x256xbf16>
    %1 = arith.extf %0 : vector<256x256xbf16> to vector<256x256xf32>
    %2 = arith.mulf %1, %1 : vector<256x256xf32>
    %cst = arith.constant dense<0.000000e+00> : vector<256xf32>
    %3 = vector.multi_reduction <add>, %2, %cst [1] : vector<256x256xf32> to vector<256xf32>
    %4 = vector.shape_cast %3 : vector<256xf32> to vector<256x1xf32>
    %cst_1 = arith.constant 2.560000e+02 : f32
    %5 = vector.broadcast %cst_1 : f32 to vector<256x1xf32>
    %6 = arith.divf %4, %5 : vector<256x1xf32>
    %cst_2 = arith.constant 9.99999974E-6 : f32
    %7 = vector.broadcast %cst_2 : f32 to vector<256x1xf32>
    %8 = arith.addf %6, %7 : vector<256x1xf32>
    %9 = math.rsqrt %8 : vector<256x1xf32>
    %10 = vector.broadcast %9 : vector<256x1xf32> to vector<256x256xf32>
    %11 = arith.mulf %1, %10 : vector<256x256xf32>
    %c0_3 = arith.constant 0 : index
    %c0_4 = arith.constant 0 : index
    %12 = vector.load %arg3[%c0_3, %c0_4] : memref<1x256xf32, #tpu.memory_space<vmem>>, vector<1x256xf32>
    %13 = vector.broadcast %12 : vector<1x256xf32> to vector<256x256xf32>
    %14 = arith.mulf %11, %13 : vector<256x256xf32>
    %c0_5 = arith.constant 0 : index
    %c0_6 = arith.constant 0 : index
    %15 = vector.load %arg4[%c0_5, %c0_6] : memref<256x256xbf16, #tpu.memory_space<vmem>>, vector<256x256xbf16>
    %16 = arith.extf %15 : vector<256x256xbf16> to vector<256x256xf32>
    %17 = arith.addf %14, %16 : vector<256x256xf32>
    %18 = arith.truncf %17 : vector<256x256xf32> to vector<256x256xbf16>
    %c0_7 = arith.constant 0 : index
    %c0_8 = arith.constant 0 : index
    %19 = vector.load %arg5[%c0_7, %c0_8] : memref<256x512xbf16, #tpu.memory_space<vmem>>, vector<256x512xbf16>
    %cst_9 = arith.constant dense<0.000000e+00> : vector<256x512xf32>
    %20 = tpu.matmul %18, %19, %cst_9 {dimension_numbers = #tpu.dot_dimension_numbers<[1], [0], [0], [1], [0, 0, 1, 1], [], []>} : vector<256x256xbf16>, vector<256x512xbf16>, vector<256x512xf32> -> vector<256x512xf32>
    %21 = arith.truncf %20 : vector<256x512xf32> to vector<256x512xbf16>
    %c0_10 = arith.constant 0 : index
    %c0_11 = arith.constant 0 : index
    %22 = vector.load %arg6[%c0_10, %c0_11] : memref<256x512xbf16, #tpu.memory_space<vmem>>, vector<256x512xbf16>
    tpu.vector_store %arg6[%c0_10, %c0_11], %21 {strides = array<i32>} : memref<256x512xbf16, #tpu.memory_space<vmem>>, vector<256x512xbf16>,
    return
  }
  func.func @transform_0(%arg0: i32, %arg1: i32) -> (i32, i32) {
    %c0_i32 = arith.constant 0 : i32
    %c0_i32_0 = arith.constant 0 : i32
    return %arg1, %c0_i32 : i32, i32
  }
  func.func @transform_1(%arg0: i32, %arg1: i32) -> (i32, i32) {
    %c0_i32 = arith.constant 0 : i32
    %c0_i32_0 = arith.constant 0 : i32
    %c0_i32_1 = arith.constant 0 : i32
    return %c0_i32, %c0_i32_0 : i32, i32
  }
  func.func @transform_2(%arg0: i32, %arg1: i32) -> (i32, i32) {
    %c1_i32 = arith.constant 1 : i32
    %c0_i32 = arith.constant 0 : i32
    %0 = arith.cmpi eq, %c1_i32, %c0_i32 : i32
    %c1_i32_0 = arith.constant 1 : i32
    %1 = arith.select %0, %c1_i32_0, %c1_i32 : i32
    %2 = arith.remsi %arg1, %1 : i32
    %c0_i32_1 = arith.constant 0 : i32
    %3 = arith.cmpi ne, %2, %c0_i32_1 : i32
    %c0_i32_2 = arith.constant 0 : i32
    %4 = arith.cmpi slt, %2, %c0_i32_2 : i32
    %c0_i32_3 = arith.constant 0 : i32
    %5 = arith.cmpi slt, %1, %c0_i32_3 : i32
    %6 = arith.xori %4, %5 : i1
    %7 = arith.andi %6, %3 : i1
    %8 = arith.addi %2, %1 : i32
    %9 = arith.select %7, %8, %2 : i32
    %c0_i32_4 = arith.constant 0 : i32
    %c0_i32_5 = arith.constant 0 : i32
    return %9, %c0_i32_4 : i32, i32
  }
  func.func @transform_3(%arg0: i32, %arg1: i32) -> (i32, i32) {
    %c0_i32 = arith.constant 0 : i32
    %c0_i32_0 = arith.constant 0 : i32
    return %c0_i32, %arg0 : i32, i32
  }
  func.func @transform_4(%arg0: i32, %arg1: i32) -> (i32, i32) {
    %c0_i32 = arith.constant 0 : i32
    return %arg1, %arg0 : i32, i32
  }
}

</mosaic_0001>

<llo_original>
// kernel: tpu_custom_call.1
$region0: #{tpu_custom_call.1}
  #allocation0 [shape = 'u32[]', space=smem, size = 0x4, offset = 0x4, fixed_abs, tag = 'smem constant byte address 0x4 - core index']
  #allocation1 [shape = 'u32[144,128]{1,0:T(1,128)}', space=vmem, size = 0x12000, scoped, tag = 'internal scratch']
  %s0 = inlined_call_operand.hbm [shape: bf16[256,256], index: 0, kind: input, shape index: {}]
  %s1 = inlined_call_operand.hbm [shape: f32[1,256], index: 1, kind: input, shape index: {}]
  %s2 = inlined_call_operand.hbm [shape: bf16[256,256], index: 2, kind: input, shape index: {}]
  %s3 = inlined_call_operand.hbm [shape: bf16[256,512], index: 3, kind: input, shape index: {}]
  %s4 = inlined_call_operand.hbm [shape: bf16[256,512], index: 4, kind: output, shape index: {}]
  %s5 = sld [smem:[#allocation0]]
  $region42: #{tpu_custom_call.1} parent=0
    _
  %s7 = ssub.s32 1, %s5
  %s8 = scalar_select 0, %s7, %s5
  $region1: #{tpu_custom_call.1} parent=0
    #allocation2 [shape = 'u8[131072]{0}', space=vmem, size = 0x20000, scoped, tag = 'input window, operand 0, single buffered']
    #allocation3 [shape = 's32[1]{0}', space=sflag, size = 0x4, scoped, tag = 'scoped memory for tpu_custom_call.1']
    #allocation4 [shape = 's32[1]{0}', space=sflag, size = 0x4, scoped, tag = 'scoped memory for tpu_custom_call.1']
    #allocation5 [shape = 'u8[1024]{0}', space=vmem, size = 0x400, scoped, tag = 'input window, operand 1, single buffered']
    #allocation6 [shape = 's32[1]{0}', space=sflag, size = 0x4, scoped, tag = 'scoped memory for tpu_custom_call.1']
    #allocation7 [shape = 'u8[131072]{0}', space=vmem, size = 0x20000, scoped, tag = 'input window, operand 2, single buffered']
    #allocation8 [shape = 'u8[262144]{0}', space=vmem, size = 0x40000, scoped, tag = 'input window, operand 3, single buffered']
    #allocation9 [shape = 's32[1]{0}', space=sflag, size = 0x4, scoped, tag = 'scoped memory for tpu_custom_call.1']
    #allocation10 [shape = 'u8[262144]{0}', space=vmem, size = 0x40000, scoped, tag = 'output window, operand 0, single buffered']
    %9 = vsyncpa [#allocation3], 0
    %10 = vsyncpa [#allocation6], 0
    %11 = vsyncpa [#allocation9], 0
    %12 = vsyncpa [#allocation4], 0
    // Predicated region
    $region2: #{tpu_custom_call.1} parent=1 // pred_check
      _
    $region3: #{tpu_custom_call.1} parent=1 // pred_check_branch
      %14 = sbr.rel (0) target = $region5
    $region4: #{tpu_custom_call.1} parent=1 // pred_region
      %s16 = ssub.s32 4096, 4096
      %17 = vsyncadd [#allocation3], %s16
      %s18 = sshll.u32 [#allocation2], 4
      %s19 = int_to_ptr.vmem [resolvable:$true] %s18
      %24 = dma.hbm_to_vmem [thread:$0]  %s0, 4096, %s19, [#allocation3], 128, 128, 8
    $region5: #{tpu_custom_call.1} parent=1 // pred_fallthru
      _
    // Predicated region
    $region6: #{tpu_custom_call.1} parent=1 // pred_check
      _
    $region7: #{tpu_custom_call.1} parent=1 // pred_check_branch
      %26 = sbr.rel (0) target = $region9
    $region8: #{tpu_custom_call.1} parent=1 // pred_region
      %s28 = ssub.s32 32, 32
      %29 = vsyncadd [#allocation6], %s28
      %s31 = sshll.u32 [#allocation5], 4
      %s32 = int_to_ptr.vmem [resolvable:$true] %s31
      %34 = dma.hbm_to_vmem [thread:$0]  %s1, 32, %s32, [#allocation6]
    $region9: #{tpu_custom_call.1} parent=1 // pred_fallthru
      _
    // Predicated region
    $region10: #{tpu_custom_call.1} parent=1 // pred_check
      _
    $region11: #{tpu_custom_call.1} parent=1 // pred_check_branch
      %36 = sbr.rel (0) target = $region13
    $region12: #{tpu_custom_call.1} parent=1 // pred_region
      %s38 = ssub.s32 4096, 4096
      %39 = vsyncadd [#allocation6], %s38
      %s40 = sshll.u32 [#allocation7], 4
      %s41 = int_to_ptr.vmem [resolvable:$true] %s40
      %46 = dma.hbm_to_vmem [thread:$0]  %s2, 4096, %s41, [#allocation6], 128, 128, 8
    $region13: #{tpu_custom_call.1} parent=1 // pred_fallthru
      _
    // Predicated region
    $region14: #{tpu_custom_call.1} parent=1 // pred_check
      _
    $region15: #{tpu_custom_call.1} parent=1 // pred_check_branch
      %48 = sbr.rel (0) target = $region17
    $region16: #{tpu_custom_call.1} parent=1 // pred_region
      %s50 = ssub.s32 8192, 8192
      %51 = vsyncadd [#allocation9], %s50
      %s52 = sshll.u32 [#allocation8], 4
      %s53 = int_to_ptr.vmem [resolvable:$true] %s52
      %58 = dma.hbm_to_vmem [thread:$0]  %s3, 8192, %s53, [#allocation9], 256, 256, 16
    $region17: #{tpu_custom_call.1} parent=1 // pred_fallthru
      _
    // Predicated region
    $region18: #{tpu_custom_call.1} parent=1 // pred_check
      _
    $region19: #{tpu_custom_call.1} parent=1 // pred_check_branch
      %60 = sbr.rel (0) target = $region21
    $region20: #{tpu_custom_call.1} parent=1 // pred_region
      %61 = dma.done [#allocation3], 4096
    $region21: #{tpu_custom_call.1} parent=1 // pred_fallthru
      _
    // Predicated region
    $region22: #{tpu_custom_call.1} parent=1 // pred_check
      _
    $region23: #{tpu_custom_call.1} parent=1 // pred_check_branch
      %63 = sbr.rel (0) target = $region25
    $region24: #{tpu_custom_call.1} parent=1 // pred_region
      %64 = dma.done [#allocation6], 32
    $region25: #{tpu_custom_call.1} parent=1 // pred_fallthru
      _
    // Predicated region
    $region26: #{tpu_custom_call.1} parent=1 // pred_check
      _
    $region27: #{tpu_custom_call.1} parent=1 // pred_check_branch
      %66 = sbr.rel (0) target = $region29
    $region28: #{tpu_custom_call.1} parent=1 // pred_region
      %67 = dma.done [#allocation6], 4096
    $region29: #{tpu_custom_call.1} parent=1 // pred_fallthru
      _
    // Predicated region
    $region30: #{tpu_custom_call.1} parent=1 // pred_check
      _
    $region31: #{tpu_custom_call.1} parent=1 // pred_check_branch
      %69 = sbr.rel (0) target = $region33
    $region32: #{tpu_custom_call.1} parent=1 // pred_region
      %70 = dma.done [#allocation9], 8192
    $region33: #{tpu_custom_call.1} parent=1 // pred_fallthru
      _
    %v71 = vld [vmem:[#allocation2] sm:$0xff]
    %v72 = vld [vmem:[#allocation2 + $0x8] sm:$0xff]
    %v73 = vld [vmem:[#allocation2 + $0x10] sm:$0xff]
    %v74 = vld [vmem:[#allocation2 + $0x18] sm:$0xff]
    %v75 = vld [vmem:[#allocation2 + $0x20] sm:$0xff]
    %v76 = vld [vmem:[#allocation2 + $0x28] sm:$0xff]
    %v77 = vld [vmem:[#allocation2 + $0x30] sm:$0xff]
    %v78 = vld [vmem:[#allocation2 + $0x38] sm:$0xff]
    %v79 = vld [vmem:[#allocation2 + $0x40] sm:$0xff]
    %v80 = vld [vmem:[#allocation2 + $0x48] sm:$0xff]
    %v81 = vld [vmem:[#allocation2 + $0x50] sm:$0xff]
    %v82 = vld [vmem:[#allocation2 + $0x58] sm:$0xff]
    %v83 = vld [vmem:[#allocation2 + $0x60] sm:$0xff]
    %v84 = vld [vmem:[#allocation2 + $0x68] sm:$0xff]
    %v85 = vld [vmem:[#allocation2 + $0x70] sm:$0xff]
    %v86 = vld [vmem:[#allocation2 + $0x78] sm:$0xff]
    %v87 = vld [vmem:[#allocation2 + $0x80] sm:$0xff]
    %v88 = vld [vmem:[#allocation2 + $0x88] sm:$0xff]
    %v89 = vld [vmem:[#allocation2 + $0x90] sm:$0xff]
    %v90 = vld [vmem:[#allocation2 + $0x98] sm:$0xff]
    %v91 = vld [vmem:[#allocation2 + $0xa0] sm:$0xff]
    %v92 = vld [vmem:[#allocation2 + $0xa8] sm:$0xff]
    %v93 = vld [vmem:[#allocation2 + $0xb0] sm:$0xff]
    %v94 = vld [vmem:[#allocation2 + $0xb8] sm:$0xff]
    %v95 = vld [vmem:[#allocation2 + $0xc0] sm:$0xff]
    %v96 = vld [vmem:[#allocation2 + $0xc8] sm:$0xff]
    %v97 = vld [vmem:[#allocation2 + $0xd0] sm:$0xff]
    %v98 = vld [vmem:[#allocation2 + $0xd8] sm:$0xff]
    %v99 = vld [vmem:[#allocation2 + $0xe0] sm:$0xff]
    %v100 = vld [vmem:[#allocation2 + $0xe8] sm:$0xff]
    %v101 = vld [vmem:[#allocation2 + $0xf0] sm:$0xff]
    %v102 = vld [vmem:[#allocation2 + $0xf8] sm:$0xff]
    %v103 = vunpack.c.l.bf16 %v71
    %v104 = vunpack.c.h.bf16 %v71
    %v105 = vunpack.c.l.bf16 %v72
    %v106 = vunpack.c.h.bf16 %v72
    %v107 = vunpack.c.l.bf16 %v73
    %v108 = vunpack.c.h.bf16 %v73
    %v109 = vunpack.c.l.bf16 %v74
    %v110 = vunpack.c.h.bf16 %v74
    %v111 = vunpack.c.l.bf16 %v75
    %v112 = vunpack.c.h.bf16 %v75
    %v113 = vunpack.c.l.bf16 %v76
    %v114 = vunpack.c.h.bf16 %v76
    %v115 = vunpack.c.l.bf16 %v77
    %v116 = vunpack.c.h.bf16 %v77
    %v117 = vunpack.c.l.bf16 %v78
    %v118 = vunpack.c.h.bf16 %v78
    %v119 = vunpack.c.l.bf16 %v79
    %v120 = vunpack.c.h.bf16 %v79
    %v121 = vunpack.c.l.bf16 %v80
    %v122 = vunpack.c.h.bf16 %v80
    %v123 = vunpack.c.l.bf16 %v81
    %v124 = vunpack.c.h.bf16 %v81
    %v125 = vunpack.c.l.bf16 %v82
    %v126 = vunpack.c.h.bf16 %v82
    %v127 = vunpack.c.l.bf16 %v83
    %v128 = vunpack.c.h.bf16 %v83
    %v129 = vunpack.c.l.bf16 %v84
    %v130 = vunpack.c.h.bf16 %v84
    %v131 = vunpack.c.l.bf16 %v85
    %v132 = vunpack.c.h.bf16 %v85
    %v133 = vunpack.c.l.bf16 %v86
    %v134 = vunpack.c.h.bf16 %v86
    %v135 = vunpack.c.l.bf16 %v87
    %v136 = vunpack.c.h.bf16 %v87
    %v137 = vunpack.c.l.bf16 %v88
    %v138 = vunpack.c.h.bf16 %v88
    %v139 = vunpack.c.l.bf16 %v89
    %v140 = vunpack.c.h.bf16 %v89
    %v141 = vunpack.c.l.bf16 %v90
    %v142 = vunpack.c.h.bf16 %v90
    %v143 = vunpack.c.l.bf16 %v91
    %v144 = vunpack.c.h.bf16 %v91
    %v145 = vunpack.c.l.bf16 %v92
    %v146 = vunpack.c.h.bf16 %v92
    %v147 = vunpack.c.l.bf16 %v93
    %v148 = vunpack.c.h.bf16 %v93
    %v149 = vunpack.c.l.bf16 %v94
    %v150 = vunpack.c.h.bf16 %v94
    %v151 = vunpack.c.l.bf16 %v95
    %v152 = vunpack.c.h.bf16 %v95
    %v153 = vunpack.c.l.bf16 %v96
    %v154 = vunpack.c.h.bf16 %v96
    %v155 = vunpack.c.l.bf16 %v97
    %v156 = vunpack.c.h.bf16 %v97
    %v157 = vunpack.c.l.bf16 %v98
    %v158 = vunpack.c.h.bf16 %v98
    %v159 = vunpack.c.l.bf16 %v99
    %v160 = vunpack.c.h.bf16 %v99
    %v161 = vunpack.c.l.bf16 %v100
    %v162 = vunpack.c.h.bf16 %v100
    %v163 = vunpack.c.l.bf16 %v101
    %v164 = vunpack.c.h.bf16 %v101
    %v165 = vunpack.c.l.bf16 %v102
    %v166 = vunpack.c.h.bf16 %v102
    %v167 = vmul.f32 %v103, %v103
    %v168 = vmul.f32 %v104, %v104
    %v169 = vmul.f32 %v105, %v105
    %v170 = vmul.f32 %v106, %v106
    %v171 = vmul.f32 %v107, %v107
    %v172 = vmul.f32 %v108, %v108
    %v173 = vmul.f32 %v109, %v109
    %v174 = vmul.f32 %v110, %v110
    %v175 = vmul.f32 %v111, %v111
    %v176 = vmul.f32 %v112, %v112
    %v177 = vmul.f32 %v113, %v113
    %v178 = vmul.f32 %v114, %v114
    %v179 = vmul.f32 %v115, %v115
    %v180 = vmul.f32 %v116, %v116
    %v181 = vmul.f32 %v117, %v117
    %v182 = vmul.f32 %v118, %v118
    %v183 = vmul.f32 %v119, %v119
    %v184 = vmul.f32 %v120, %v120
    %v185 = vmul.f32 %v121, %v121
    %v186 = vmul.f32 %v122, %v122
    %v187 = vmul.f32 %v123, %v123
    %v188 = vmul.f32 %v124, %v124
    %v189 = vmul.f32 %v125, %v125
    %v190 = vmul.f32 %v126, %v126
    %v191 = vmul.f32 %v127, %v127
    %v192 = vmul.f32 %v128, %v128
    %v193 = vmul.f32 %v129, %v129
    %v194 = vmul.f32 %v130, %v130
    %v195 = vmul.f32 %v131, %v131
    %v196 = vmul.f32 %v132, %v132
    %v197 = vmul.f32 %v133, %v133
    %v198 = vmul.f32 %v134, %v134
    %v199 = vmul.f32 %v135, %v135
    %v200 = vmul.f32 %v136, %v136
    %v201 = vmul.f32 %v137, %v137
    %v202 = vmul.f32 %v138, %v138
    %v203 = vmul.f32 %v139, %v139
    %v204 = vmul.f32 %v140, %v140
    %v205 = vmul.f32 %v141, %v141
    %v206 = vmul.f32 %v142, %v142
    %v207 = vmul.f32 %v143, %v143
    %v208 = vmul.f32 %v144, %v144
    %v209 = vmul.f32 %v145, %v145
    %v210 = vmul.f32 %v146, %v146
    %v211 = vmul.f32 %v147, %v147
    %v212 = vmul.f32 %v148, %v148
    %v213 = vmul.f32 %v149, %v149
    %v214 = vmul.f32 %v150, %v150
    %v215 = vmul.f32 %v151, %v151
    %v216 = vmul.f32 %v152, %v152
    %v217 = vmul.f32 %v153, %v153
    %v218 = vmul.f32 %v154, %v154
    %v219 = vmul.f32 %v155, %v155
    %v220 = vmul.f32 %v156, %v156
    %v221 = vmul.f32 %v157, %v157
    %v222 = vmul.f32 %v158, %v158
    %v223 = vmul.f32 %v159, %v159
    %v224 = vmul.f32 %v160, %v160
    %v225 = vmul.f32 %v161, %v161
    %v226 = vmul.f32 %v162, %v162
    %v227 = vmul.f32 %v163, %v163
    %v228 = vmul.f32 %v164, %v164
    %v229 = vmul.f32 %v165, %v165
    %v230 = vmul.f32 %v166, %v166
    %v231 = vadd.f32 %v167, %v168
    %232 = vadd.xlane.f32.xlu0 %v231
    %v233 = vpop.xlane.xlu0 %232
    %v234 = vadd.f32 %v169, %v170
    %235 = vadd.xlane.f32.xlu0 %v234
    %v236 = vpop.xlane.xlu0 %235
    %v237 = vadd.f32 %v171, %v172
    %238 = vadd.xlane.f32.xlu0 %v237
    %v239 = vpop.xlane.xlu0 %238
    %v240 = vadd.f32 %v173, %v174
    %241 = vadd.xlane.f32.xlu0 %v240
    %v242 = vpop.xlane.xlu0 %241
    %v243 = vadd.f32 %v175, %v176
    %244 = vadd.xlane.f32.xlu0 %v243
    %v245 = vpop.xlane.xlu0 %244
    %v246 = vadd.f32 %v177, %v178
    %247 = vadd.xlane.f32.xlu0 %v246
    %v248 = vpop.xlane.xlu0 %247
    %v249 = vadd.f32 %v179, %v180
    %250 = vadd.xlane.f32.xlu0 %v249
    %v251 = vpop.xlane.xlu0 %250
    %v252 = vadd.f32 %v181, %v182
    %253 = vadd.xlane.f32.xlu0 %v252
    %v254 = vpop.xlane.xlu0 %253
    %v255 = vadd.f32 %v183, %v184
    %256 = vadd.xlane.f32.xlu0 %v255
    %v257 = vpop.xlane.xlu0 %256
    %v258 = vadd.f32 %v185, %v186
    %259 = vadd.xlane.f32.xlu0 %v258
    %v260 = vpop.xlane.xlu0 %259
    %v261 = vadd.f32 %v187, %v188
    %262 = vadd.xlane.f32.xlu0 %v261
    %v263 = vpop.xlane.xlu0 %262
    %v264 = vadd.f32 %v189, %v190
    %265 = vadd.xlane.f32.xlu0 %v264
    %v266 = vpop.xlane.xlu0 %265
    %v267 = vadd.f32 %v191, %v192
    %268 = vadd.xlane.f32.xlu0 %v267
    %v269 = vpop.xlane.xlu0 %268
    %v270 = vadd.f32 %v193, %v194
    %271 = vadd.xlane.f32.xlu0 %v270
    %v272 = vpop.xlane.xlu0 %271
    %v273 = vadd.f32 %v195, %v196
    %274 = vadd.xlane.f32.xlu0 %v273
    %v275 = vpop.xlane.xlu0 %274
    %v276 = vadd.f32 %v197, %v198
    %277 = vadd.xlane.f32.xlu0 %v276
    %v278 = vpop.xlane.xlu0 %277
    %v279 = vadd.f32 %v199, %v200
    %280 = vadd.xlane.f32.xlu0 %v279
    %v281 = vpop.xlane.xlu0 %280
    %v282 = vadd.f32 %v201, %v202
    %283 = vadd.xlane.f32.xlu0 %v282
    %v284 = vpop.xlane.xlu0 %283
    %v285 = vadd.f32 %v203, %v204
    %286 = vadd.xlane.f32.xlu0 %v285
    %v287 = vpop.xlane.xlu0 %286
    %v288 = vadd.f32 %v205, %v206
    %289 = vadd.xlane.f32.xlu0 %v288
    %v290 = vpop.xlane.xlu0 %289
    %v291 = vadd.f32 %v207, %v208
    %292 = vadd.xlane.f32.xlu0 %v291
    %v293 = vpop.xlane.xlu0 %292
    %v294 = vadd.f32 %v209, %v210
    %295 = vadd.xlane.f32.xlu0 %v294
    %v296 = vpop.xlane.xlu0 %295
    %v297 = vadd.f32 %v211, %v212
    %298 = vadd.xlane.f32.xlu0 %v297
    %v299 = vpop.xlane.xlu0 %298
    %v300 = vadd.f32 %v213, %v214
    %301 = vadd.xlane.f32.xlu0 %v300
    %v302 = vpop.xlane.xlu0 %301
    %v303 = vadd.f32 %v215, %v216
    %304 = vadd.xlane.f32.xlu0 %v303
    %v305 = vpop.xlane.xlu0 %304
    %v306 = vadd.f32 %v217, %v218
    %307 = vadd.xlane.f32.xlu0 %v306
    %v308 = vpop.xlane.xlu0 %307
    %v309 = vadd.f32 %v219, %v220
    %310 = vadd.xlane.f32.xlu0 %v309
    %v311 = vpop.xlane.xlu0 %310
    %v312 = vadd.f32 %v221, %v222
    %313 = vadd.xlane.f32.xlu0 %v312
    %v314 = vpop.xlane.xlu0 %313
    %v315 = vadd.f32 %v223, %v224
    %316 = vadd.xlane.f32.xlu0 %v315
    %v317 = vpop.xlane.xlu0 %316
    %v318 = vadd.f32 %v225, %v226
    %319 = vadd.xlane.f32.xlu0 %v318
    %v320 = vpop.xlane.xlu0 %319
    %v321 = vadd.f32 %v227, %v228
    %322 = vadd.xlane.f32.xlu0 %v321
    %v323 = vpop.xlane.xlu0 %322
    %v324 = vadd.f32 %v229, %v230
    %325 = vadd.xlane.f32.xlu0 %v324
    %v326 = vpop.xlane.xlu0 %325
    %v327 = vrcp.pop 256.0
    %v328 = vmul.f32 %v233, %v327
    %v329 = vmul.f32 %v236, %v327
    %v330 = vmul.f32 %v239, %v327
    %v331 = vmul.f32 %v242, %v327
    %v332 = vmul.f32 %v245, %v327
    %v333 = vmul.f32 %v248, %v327
    %v334 = vmul.f32 %v251, %v327
    %v335 = vmul.f32 %v254, %v327
    %v336 = vmul.f32 %v257, %v327
    %v337 = vmul.f32 %v260, %v327
    %v338 = vmul.f32 %v263, %v327
    %v339 = vmul.f32 %v266, %v327
    %v340 = vmul.f32 %v269, %v327
    %v341 = vmul.f32 %v272, %v327
    %v342 = vmul.f32 %v275, %v327
    %v343 = vmul.f32 %v278, %v327
    %v344 = vmul.f32 %v281, %v327
    %v345 = vmul.f32 %v284, %v327
    %v346 = vmul.f32 %v287, %v327
    %v347 = vmul.f32 %v290, %v327
    %v348 = vmul.f32 %v293, %v327
    %v349 = vmul.f32 %v296, %v327
    %v350 = vmul.f32 %v299, %v327
    %v351 = vmul.f32 %v302, %v327
    %v352 = vmul.f32 %v305, %v327
    %v353 = vmul.f32 %v308, %v327
    %v354 = vmul.f32 %v311, %v327
    %v355 = vmul.f32 %v314, %v327
    %v356 = vmul.f32 %v317, %v327
    %v357 = vmul.f32 %v320, %v327
    %v358 = vmul.f32 %v323, %v327
    %v359 = vmul.f32 %v326, %v327
    %v360 = vadd.f32 %v328, 1e-05
    %v361 = vadd.f32 %v329, 1e-05
    %v362 = vadd.f32 %v330, 1e-05
    %v363 = vadd.f32 %v331, 1e-05
    %v364 = vadd.f32 %v332, 1e-05
    %v365 = vadd.f32 %v333, 1e-05
    %v366 = vadd.f32 %v334, 1e-05
    %v367 = vadd.f32 %v335, 1e-05
    %v368 = vadd.f32 %v336, 1e-05
    %v369 = vadd.f32 %v337, 1e-05
    %v370 = vadd.f32 %v338, 1e-05
    %v371 = vadd.f32 %v339, 1e-05
    %v372 = vadd.f32 %v340, 1e-05
    %v373 = vadd.f32 %v341, 1e-05
    %v374 = vadd.f32 %v342, 1e-05
    %v375 = vadd.f32 %v343, 1e-05
    %v376 = vadd.f32 %v344, 1e-05
    %v377 = vadd.f32 %v345, 1e-05
    %v378 = vadd.f32 %v346, 1e-05
    %v379 = vadd.f32 %v347, 1e-05
    %v380 = vadd.f32 %v348, 1e-05
    %v381 = vadd.f32 %v349, 1e-05
    %v382 = vadd.f32 %v350, 1e-05
    %v383 = vadd.f32 %v351, 1e-05
    %v384 = vadd.f32 %v352, 1e-05
    %v385 = vadd.f32 %v353, 1e-05
    %v386 = vadd.f32 %v354, 1e-05
    %v387 = vadd.f32 %v355, 1e-05
    %v388 = vadd.f32 %v356, 1e-05
    %v389 = vadd.f32 %v357, 1e-05
    %v390 = vadd.f32 %v358, 1e-05
    %v391 = vadd.f32 %v359, 1e-05
    %v392 = vrsqrt.pop %v360
    %v393 = vrsqrt.pop %v361
    %v394 = vrsqrt.pop %v362
    %v395 = vrsqrt.pop %v363
    %v396 = vrsqrt.pop %v364
    %v397 = vrsqrt.pop %v365
    %v398 = vrsqrt.pop %v366
    %v399 = vrsqrt.pop %v367
    %v400 = vrsqrt.pop %v368
    %v401 = vrsqrt.pop %v369
    %v402 = vrsqrt.pop %v370
    %v403 = vrsqrt.pop %v371
    %v404 = vrsqrt.pop %v372
    %v405 = vrsqrt.pop %v373
    %v406 = vrsqrt.pop %v374
    %v407 = vrsqrt.pop %v375
    %v408 = vrsqrt.pop %v376
    %v409 = vrsqrt.pop %v377
    %v410 = vrsqrt.pop %v378
    %v411 = vrsqrt.pop %v379
    %v412 = vrsqrt.pop %v380
    %v413 = vrsqrt.pop %v381
    %v414 = vrsqrt.pop %v382
    %v415 = vrsqrt.pop %v383
    %v416 = vrsqrt.pop %v384
    %v417 = vrsqrt.pop %v385
    %v418 = vrsqrt.pop %v386
    %v419 = vrsqrt.pop %v387
    %v420 = vrsqrt.pop %v388
    %v421 = vrsqrt.pop %v389
    %v422 = vrsqrt.pop %v390
    %v423 = vrsqrt.pop %v391
    %v424 = vmul.f32 %v103, %v392
    %v425 = vmul.f32 %v104, %v392
    %v426 = vmul.f32 %v105, %v393
    %v427 = vmul.f32 %v106, %v393
    %v428 = vmul.f32 %v107, %v394
    %v429 = vmul.f32 %v108, %v394
    %v430 = vmul.f32 %v109, %v395
    %v431 = vmul.f32 %v110, %v395
    %v432 = vmul.f32 %v111, %v396
    %v433 = vmul.f32 %v112, %v396
    %v434 = vmul.f32 %v113, %v397
    %v435 = vmul.f32 %v114, %v397
    %v436 = vmul.f32 %v115, %v398
    %v437 = vmul.f32 %v116, %v398
    %v438 = vmul.f32 %v117, %v399
    %v439 = vmul.f32 %v118, %v399
    %v440 = vmul.f32 %v119, %v400
    %v441 = vmul.f32 %v120, %v400
    %v442 = vmul.f32 %v121, %v401
    %v443 = vmul.f32 %v122, %v401
    %v444 = vmul.f32 %v123, %v402
    %v445 = vmul.f32 %v124, %v402
    %v446 = vmul.f32 %v125, %v403
    %v447 = vmul.f32 %v126, %v403
    %v448 = vmul.f32 %v127, %v404
    %v449 = vmul.f32 %v128, %v404
    %v450 = vmul.f32 %v129, %v405
    %v451 = vmul.f32 %v130, %v405
    %v452 = vmul.f32 %v131, %v406
    %v453 = vmul.f32 %v132, %v406
    %v454 = vmul.f32 %v133, %v407
    %v455 = vmul.f32 %v134, %v407
    %v456 = vmul.f32 %v135, %v408
    %v457 = vmul.f32 %v136, %v408
    %v458 = vmul.f32 %v137, %v409
    %v459 = vmul.f32 %v138, %v409
    %v460 = vmul.f32 %v139, %v410
    %v461 = vmul.f32 %v140, %v410
    %v462 = vmul.f32 %v141, %v411
    %v463 = vmul.f32 %v142, %v411
    %v464 = vmul.f32 %v143, %v412
    %v465 = vmul.f32 %v144, %v412
    %v466 = vmul.f32 %v145, %v413
    %v467 = vmul.f32 %v146, %v413
    %v468 = vmul.f32 %v147, %v414
    %v469 = vmul.f32 %v148, %v414
    %v470 = vmul.f32 %v149, %v415
    %v471 = vmul.f32 %v150, %v415
    %v472 = vmul.f32 %v151, %v416
    %v473 = vmul.f32 %v152, %v416
    %v474 = vmul.f32 %v153, %v417
    %v475 = vmul.f32 %v154, %v417
    %v476 = vmul.f32 %v155, %v418
    %v477 = vmul.f32 %v156, %v418
    %v478 = vmul.f32 %v157, %v419
    %v479 = vmul.f32 %v158, %v419
    %v480 = vmul.f32 %v159, %v420
    %v481 = vmul.f32 %v160, %v420
    %v482 = vmul.f32 %v161, %v421
    %v483 = vmul.f32 %v162, %v421
    %v484 = vmul.f32 %v163, %v422
    %v485 = vmul.f32 %v164, %v422
    %v486 = vmul.f32 %v165, %v423
    %v487 = vmul.f32 %v166, %v423
    %v488 = vld [vmem:[#allocation5] sm:$0x3]
    %v490 = vlaneseq
    %v491 = vshrl.u32 %v490, 7
    %v492 = vsub.s32 0, %v491
    %v493 = vrot.slane %v488, %v492
    %v494 = vlaneseq
    %v495 = vshrl.u32 %v494, 7
    %v496 = vsub.s32 1, %v495
    %v497 = vrot.slane %v488, %v496
    %v500 = vmul.f32 %v424, %v493
    %v501 = vmul.f32 %v425, %v497
    %v502 = vmul.f32 %v426, %v493
    %v503 = vmul.f32 %v427, %v497
    %v504 = vmul.f32 %v428, %v493
    %v505 = vmul.f32 %v429, %v497
    %v506 = vmul.f32 %v430, %v493
    %v507 = vmul.f32 %v431, %v497
    %v508 = vmul.f32 %v432, %v493
    %v509 = vmul.f32 %v433, %v497
    %v510 = vmul.f32 %v434, %v493
    %v511 = vmul.f32 %v435, %v497
    %v512 = vmul.f32 %v436, %v493
    %v513 = vmul.f32 %v437, %v497
    %v514 = vmul.f32 %v438, %v493
    %v515 = vmul.f32 %v439, %v497
    %v516 = vmul.f32 %v440, %v493
    %v517 = vmul.f32 %v441, %v497
    %v518 = vmul.f32 %v442, %v493
    %v519 = vmul.f32 %v443, %v497
    %v520 = vmul.f32 %v444, %v493
    %v521 = vmul.f32 %v445, %v497
    %v522 = vmul.f32 %v446, %v493
    %v523 = vmul.f32 %v447, %v497
    %v524 = vmul.f32 %v448, %v493
    %v525 = vmul.f32 %v449, %v497
    %v526 = vmul.f32 %v450, %v493
    %v527 = vmul.f32 %v451, %v497
    %v528 = vmul.f32 %v452, %v493
    %v529 = vmul.f32 %v453, %v497
    %v530 = vmul.f32 %v454, %v493
    %v531 = vmul.f32 %v455, %v497
    %v532 = vmul.f32 %v456, %v493
    %v533 = vmul.f32 %v457, %v497
    %v534 = vmul.f32 %v458, %v493
    %v535 = vmul.f32 %v459, %v497
    %v536 = vmul.f32 %v460, %v493
    %v537 = vmul.f32 %v461, %v497
    %v538 = vmul.f32 %v462, %v493
    %v539 = vmul.f32 %v463, %v497
    %v540 = vmul.f32 %v464, %v493
    %v541 = vmul.f32 %v465, %v497
    %v542 = vmul.f32 %v466, %v493
    %v543 = vmul.f32 %v467, %v497
    %v544 = vmul.f32 %v468, %v493
    %v545 = vmul.f32 %v469, %v497
    %v546 = vmul.f32 %v470, %v493
    %v547 = vmul.f32 %v471, %v497
    %v548 = vmul.f32 %v472, %v493
    %v549 = vmul.f32 %v473, %v497
    %v550 = vmul.f32 %v474, %v493
    %v551 = vmul.f32 %v475, %v497
    %v552 = vmul.f32 %v476, %v493
    %v553 = vmul.f32 %v477, %v497
    %v554 = vmul.f32 %v478, %v493
    %v555 = vmul.f32 %v479, %v497
    %v556 = vmul.f32 %v480, %v493
    %v557 = vmul.f32 %v481, %v497
    %v558 = vmul.f32 %v482, %v493
    %v559 = vmul.f32 %v483, %v497
    %v560 = vmul.f32 %v484, %v493
    %v561 = vmul.f32 %v485, %v497
    %v562 = vmul.f32 %v486, %v493
    %v563 = vmul.f32 %v487, %v497
    %v564 = vld [vmem:[#allocation7] sm:$0xff]
    %v565 = vld [vmem:[#allocation7 + $0x8] sm:$0xff]
    %v566 = vld [vmem:[#allocation7 + $0x10] sm:$0xff]
    %v567 = vld [vmem:[#allocation7 + $0x18] sm:$0xff]
    %v568 = vld [vmem:[#allocation7 + $0x20] sm:$0xff]
    %v569 = vld [vmem:[#allocation7 + $0x28] sm:$0xff]
    %v570 = vld [vmem:[#allocation7 + $0x30] sm:$0xff]
    %v571 = vld [vmem:[#allocation7 + $0x38] sm:$0xff]
    %v572 = vld [vmem:[#allocation7 + $0x40] sm:$0xff]
    %v573 = vld [vmem:[#allocation7 + $0x48] sm:$0xff]
    %v574 = vld [vmem:[#allocation7 + $0x50] sm:$0xff]
    %v575 = vld [vmem:[#allocation7 + $0x58] sm:$0xff]
    %v576 = vld [vmem:[#allocation7 + $0x60] sm:$0xff]
    %v577 = vld [vmem:[#allocation7 + $0x68] sm:$0xff]
    %v578 = vld [vmem:[#allocation7 + $0x70] sm:$0xff]
    %v579 = vld [vmem:[#allocation7 + $0x78] sm:$0xff]
    %v580 = vld [vmem:[#allocation7 + $0x80] sm:$0xff]
    %v581 = vld [vmem:[#allocation7 + $0x88] sm:$0xff]
    %v582 = vld [vmem:[#allocation7 + $0x90] sm:$0xff]
    %v583 = vld [vmem:[#allocation7 + $0x98] sm:$0xff]
    %v584 = vld [vmem:[#allocation7 + $0xa0] sm:$0xff]
    %v585 = vld [vmem:[#allocation7 + $0xa8] sm:$0xff]
    %v586 = vld [vmem:[#allocation7 + $0xb0] sm:$0xff]
    %v587 = vld [vmem:[#allocation7 + $0xb8] sm:$0xff]
    %v588 = vld [vmem:[#allocation7 + $0xc0] sm:$0xff]
    %v589 = vld [vmem:[#allocation7 + $0xc8] sm:$0xff]
    %v590 = vld [vmem:[#allocation7 + $0xd0] sm:$0xff]
    %v591 = vld [vmem:[#allocation7 + $0xd8] sm:$0xff]
    %v592 = vld [vmem:[#allocation7 + $0xe0] sm:$0xff]
    %v593 = vld [vmem:[#allocation7 + $0xe8] sm:$0xff]
    %v594 = vld [vmem:[#allocation7 + $0xf0] sm:$0xff]
    %v595 = vld [vmem:[#allocation7 + $0xf8] sm:$0xff]
    %v596 = vunpack.c.l.bf16 %v564
    %v597 = vunpack.c.h.bf16 %v564
    %v598 = vunpack.c.l.bf16 %v565
    %v599 = vunpack.c.h.bf16 %v565
    %v600 = vunpack.c.l.bf16 %v566
    %v601 = vunpack.c.h.bf16 %v566
    %v602 = vunpack.c.l.bf16 %v567
    %v603 = vunpack.c.h.bf16 %v567
    %v604 = vunpack.c.l.bf16 %v568
    %v605 = vunpack.c.h.bf16 %v568
    %v606 = vunpack.c.l.bf16 %v569
    %v607 = vunpack.c.h.bf16 %v569
    %v608 = vunpack.c.l.bf16 %v570
    %v609 = vunpack.c.h.bf16 %v570
    %v610 = vunpack.c.l.bf16 %v571
    %v611 = vunpack.c.h.bf16 %v571
    %v612 = vunpack.c.l.bf16 %v572
    %v613 = vunpack.c.h.bf16 %v572
    %v614 = vunpack.c.l.bf16 %v573
    %v615 = vunpack.c.h.bf16 %v573
    %v616 = vunpack.c.l.bf16 %v574
    %v617 = vunpack.c.h.bf16 %v574
    %v618 = vunpack.c.l.bf16 %v575
    %v619 = vunpack.c.h.bf16 %v575
    %v620 = vunpack.c.l.bf16 %v576
    %v621 = vunpack.c.h.bf16 %v576
    %v622 = vunpack.c.l.bf16 %v577
    %v623 = vunpack.c.h.bf16 %v577
    %v624 = vunpack.c.l.bf16 %v578
    %v625 = vunpack.c.h.bf16 %v578
    %v626 = vunpack.c.l.bf16 %v579
    %v627 = vunpack.c.h.bf16 %v579
    %v628 = vunpack.c.l.bf16 %v580
    %v629 = vunpack.c.h.bf16 %v580
    %v630 = vunpack.c.l.bf16 %v581
    %v631 = vunpack.c.h.bf16 %v581
    %v632 = vunpack.c.l.bf16 %v582
    %v633 = vunpack.c.h.bf16 %v582
    %v634 = vunpack.c.l.bf16 %v583
    %v635 = vunpack.c.h.bf16 %v583
    %v636 = vunpack.c.l.bf16 %v584
    %v637 = vunpack.c.h.bf16 %v584
    %v638 = vunpack.c.l.bf16 %v585
    %v639 = vunpack.c.h.bf16 %v585
    %v640 = vunpack.c.l.bf16 %v586
    %v641 = vunpack.c.h.bf16 %v586
    %v642 = vunpack.c.l.bf16 %v587
    %v643 = vunpack.c.h.bf16 %v587
    %v644 = vunpack.c.l.bf16 %v588
    %v645 = vunpack.c.h.bf16 %v588
    %v646 = vunpack.c.l.bf16 %v589
    %v647 = vunpack.c.h.bf16 %v589
    %v648 = vunpack.c.l.bf16 %v590
    %v649 = vunpack.c.h.bf16 %v590
    %v650 = vunpack.c.l.bf16 %v591
    %v651 = vunpack.c.h.bf16 %v591
    %v652 = vunpack.c.l.bf16 %v592
    %v653 = vunpack.c.h.bf16 %v592
    %v654 = vunpack.c.l.bf16 %v593
    %v655 = vunpack.c.h.bf16 %v593
    %v656 = vunpack.c.l.bf16 %v594
    %v657 = vunpack.c.h.bf16 %v594
    %v658 = vunpack.c.l.bf16 %v595
    %v659 = vunpack.c.h.bf16 %v595
    %v660 = vadd.f32 %v500, %v596
    %v661 = vadd.f32 %v501, %v597
    %v662 = vadd.f32 %v502, %v598
    %v663 = vadd.f32 %v503, %v599
    %v664 = vadd.f32 %v504, %v600
    %v665 = vadd.f32 %v505, %v601
    %v666 = vadd.f32 %v506, %v602
    %v667 = vadd.f32 %v507, %v603
    %v668 = vadd.f32 %v508, %v604
    %v669 = vadd.f32 %v509, %v605
    %v670 = vadd.f32 %v510, %v606
    %v671 = vadd.f32 %v511, %v607
    %v672 = vadd.f32 %v512, %v608
    %v673 = vadd.f32 %v513, %v609
    %v674 = vadd.f32 %v514, %v610
    %v675 = vadd.f32 %v515, %v611
    %v676 = vadd.f32 %v516, %v612
    %v677 = vadd.f32 %v517, %v613
    %v678 = vadd.f32 %v518, %v614
    %v679 = vadd.f32 %v519, %v615
    %v680 = vadd.f32 %v520, %v616
    %v681 = vadd.f32 %v521, %v617
    %v682 = vadd.f32 %v522, %v618
    %v683 = vadd.f32 %v523, %v619
    %v684 = vadd.f32 %v524, %v620
    %v685 = vadd.f32 %v525, %v621
    %v686 = vadd.f32 %v526, %v622
    %v687 = vadd.f32 %v527, %v623
    %v688 = vadd.f32 %v528, %v624
    %v689 = vadd.f32 %v529, %v625
    %v690 = vadd.f32 %v530, %v626
    %v691 = vadd.f32 %v531, %v627
    %v692 = vadd.f32 %v532, %v628
    %v693 = vadd.f32 %v533, %v629
    %v694 = vadd.f32 %v534, %v630
    %v695 = vadd.f32 %v535, %v631
    %v696 = vadd.f32 %v536, %v632
    %v697 = vadd.f32 %v537, %v633
    %v698 = vadd.f32 %v538, %v634
    %v699 = vadd.f32 %v539, %v635
    %v700 = vadd.f32 %v540, %v636
    %v701 = vadd.f32 %v541, %v637
    %v702 = vadd.f32 %v542, %v638
    %v703 = vadd.f32 %v543, %v639
    %v704 = vadd.f32 %v544, %v640
    %v705 = vadd.f32 %v545, %v641
    %v706 = vadd.f32 %v546, %v642
    %v707 = vadd.f32 %v547, %v643
    %v708 = vadd.f32 %v548, %v644
    %v709 = vadd.f32 %v549, %v645
    %v710 = vadd.f32 %v550, %v646
    %v711 = vadd.f32 %v551, %v647
    %v712 = vadd.f32 %v552, %v648
    %v713 = vadd.f32 %v553, %v649
    %v714 = vadd.f32 %v554, %v650
    %v715 = vadd.f32 %v555, %v651
    %v716 = vadd.f32 %v556, %v652
    %v717 = vadd.f32 %v557, %v653
    %v718 = vadd.f32 %v558, %v654
    %v719 = vadd.f32 %v559, %v655
    %v720 = vadd.f32 %v560, %v656
    %v721 = vadd.f32 %v561, %v657
    %v722 = vadd.f32 %v562, %v658
    %v723 = vadd.f32 %v563, %v659
    %v724 = vpack.c.bf16 %v662, %v660
    %v725 = vpack.c.bf16 %v663, %v661
    %v726 = vpack.c.bf16 %v666, %v664
    %v727 = vpack.c.bf16 %v667, %v665
    %v728 = vpack.c.bf16 %v670, %v668
    %v729 = vpack.c.bf16 %v671, %v669
    %v730 = vpack.c.bf16 %v674, %v672
    %v731 = vpack.c.bf16 %v675, %v673
    %v732 = vpack.c.bf16 %v678, %v676
    %v733 = vpack.c.bf16 %v679, %v677
    %v734 = vpack.c.bf16 %v682, %v680
    %v735 = vpack.c.bf16 %v683, %v681
    %v736 = vpack.c.bf16 %v686, %v684
    %v737 = vpack.c.bf16 %v687, %v685
    %v738 = vpack.c.bf16 %v690, %v688
    %v739 = vpack.c.bf16 %v691, %v689
    %v740 = vpack.c.bf16 %v694, %v692
    %v741 = vpack.c.bf16 %v695, %v693
    %v742 = vpack.c.bf16 %v698, %v696
    %v743 = vpack.c.bf16 %v699, %v697
    %v744 = vpack.c.bf16 %v702, %v700
    %v745 = vpack.c.bf16 %v703, %v701
    %v746 = vpack.c.bf16 %v706, %v704
    %v747 = vpack.c.bf16 %v707, %v705
    %v748 = vpack.c.bf16 %v710, %v708
    %v749 = vpack.c.bf16 %v711, %v709
    %v750 = vpack.c.bf16 %v714, %v712
    %v751 = vpack.c.bf16 %v715, %v713
    %v752 = vpack.c.bf16 %v718, %v716
    %v753 = vpack.c.bf16 %v719, %v717
    %v754 = vpack.c.bf16 %v722, %v720
    %v755 = vpack.c.bf16 %v723, %v721
    %v756 = vld [vmem:[#allocation8] sm:$0xff]
    %v757 = vld [vmem:[#allocation8 + $0x8] sm:$0xff]
    %v758 = vld [vmem:[#allocation8 + $0x10] sm:$0xff]
    %v759 = vld [vmem:[#allocation8 + $0x18] sm:$0xff]
    %v760 = vld [vmem:[#allocation8 + $0x20] sm:$0xff]
    %v761 = vld [vmem:[#allocation8 + $0x28] sm:$0xff]
    %v762 = vld [vmem:[#allocation8 + $0x30] sm:$0xff]
    %v763 = vld [vmem:[#allocation8 + $0x38] sm:$0xff]
    %v764 = vld [vmem:[#allocation8 + $0x40] sm:$0xff]
    %v765 = vld [vmem:[#allocation8 + $0x48] sm:$0xff]
    %v766 = vld [vmem:[#allocation8 + $0x50] sm:$0xff]
    %v767 = vld [vmem:[#allocation8 + $0x58] sm:$0xff]
    %v768 = vld [vmem:[#allocation8 + $0x60] sm:$0xff]
    %v769 = vld [vmem:[#allocation8 + $0x68] sm:$0xff]
    %v770 = vld [vmem:[#allocation8 + $0x70] sm:$0xff]
    %v771 = vld [vmem:[#allocation8 + $0x78] sm:$0xff]
    %v772 = vld [vmem:[#allocation8 + $0x80] sm:$0xff]
    %v773 = vld [vmem:[#allocation8 + $0x88] sm:$0xff]
    %v774 = vld [vmem:[#allocation8 + $0x90] sm:$0xff]
    %v775 = vld [vmem:[#allocation8 + $0x98] sm:$0xff]
    %v776 = vld [vmem:[#allocation8 + $0xa0] sm:$0xff]
    %v777 = vld [vmem:[#allocation8 + $0xa8] sm:$0xff]
    %v778 = vld [vmem:[#allocation8 + $0xb0] sm:$0xff]
    %v779 = vld [vmem:[#allocation8 + $0xb8] sm:$0xff]
    %v780 = vld [vmem:[#allocation8 + $0xc0] sm:$0xff]
    %v781 = vld [vmem:[#allocation8 + $0xc8] sm:$0xff]
    %v782 = vld [vmem:[#allocation8 + $0xd0] sm:$0xff]
    %v783 = vld [vmem:[#allocation8 + $0xd8] sm:$0xff]
    %v784 = vld [vmem:[#allocation8 + $0xe0] sm:$0xff]
    %v785 = vld [vmem:[#allocation8 + $0xe8] sm:$0xff]
    %v786 = vld [vmem:[#allocation8 + $0xf0] sm:$0xff]
    %v787 = vld [vmem:[#allocation8 + $0xf8] sm:$0xff]
    %v788 = vld [vmem:[#allocation8 + $0x100] sm:$0xff]
    %v789 = vld [vmem:[#allocation8 + $0x108] sm:$0xff]
    %v790 = vld [vmem:[#allocation8 + $0x110] sm:$0xff]
    %v791 = vld [vmem:[#allocation8 + $0x118] sm:$0xff]
    %v792 = vld [vmem:[#allocation8 + $0x120] sm:$0xff]
    %v793 = vld [vmem:[#allocation8 + $0x128] sm:$0xff]
    %v794 = vld [vmem:[#allocation8 + $0x130] sm:$0xff]
    %v795 = vld [vmem:[#allocation8 + $0x138] sm:$0xff]
    %v796 = vld [vmem:[#allocation8 + $0x140] sm:$0xff]
    %v797 = vld [vmem:[#allocation8 + $0x148] sm:$0xff]
    %v798 = vld [vmem:[#allocation8 + $0x150] sm:$0xff]
    %v799 = vld [vmem:[#allocation8 + $0x158] sm:$0xff]
    %v800 = vld [vmem:[#allocation8 + $0x160] sm:$0xff]
    %v801 = vld [vmem:[#allocation8 + $0x168] sm:$0xff]
    %v802 = vld [vmem:[#allocation8 + $0x170] sm:$0xff]
    %v803 = vld [vmem:[#allocation8 + $0x178] sm:$0xff]
    %v804 = vld [vmem:[#allocation8 + $0x180] sm:$0xff]
    %v805 = vld [vmem:[#allocation8 + $0x188] sm:$0xff]
    %v806 = vld [vmem:[#allocation8 + $0x190] sm:$0xff]
    %v807 = vld [vmem:[#allocation8 + $0x198] sm:$0xff]
    %v808 = vld [vmem:[#allocation8 + $0x1a0] sm:$0xff]
    %v809 = vld [vmem:[#allocation8 + $0x1a8] sm:$0xff]
    %v810 = vld [vmem:[#allocation8 + $0x1b0] sm:$0xff]
    %v811 = vld [vmem:[#allocation8 + $0x1b8] sm:$0xff]
    %v812 = vld [vmem:[#allocation8 + $0x1c0] sm:$0xff]
    %v813 = vld [vmem:[#allocation8 + $0x1c8] sm:$0xff]
    %v814 = vld [vmem:[#allocation8 + $0x1d0] sm:$0xff]
    %v815 = vld [vmem:[#allocation8 + $0x1d8] sm:$0xff]
    %v816 = vld [vmem:[#allocation8 + $0x1e0] sm:$0xff]
    %v817 = vld [vmem:[#allocation8 + $0x1e8] sm:$0xff]
    %v818 = vld [vmem:[#allocation8 + $0x1f0] sm:$0xff]
    %v819 = vld [vmem:[#allocation8 + $0x1f8] sm:$0xff]
    %v884 = vunpack.c.l.b16 %v756
    %v885 = vunpack.c.h.b16 %v756
    %v886 = vunpack.c.l.b16 %v757
    %v887 = vunpack.c.h.b16 %v757
    %v888 = vunpack.c.l.b16 %v758
    %v889 = vunpack.c.h.b16 %v758
    %v890 = vunpack.c.l.b16 %v759
    %v891 = vunpack.c.h.b16 %v759
    %v892 = vunpack.c.l.b16 %v760
    %v893 = vunpack.c.h.b16 %v760
    %v894 = vunpack.c.l.b16 %v761
    %v895 = vunpack.c.h.b16 %v761
    %v896 = vunpack.c.l.b16 %v762
    %v897 = vunpack.c.h.b16 %v762
    %v898 = vunpack.c.l.b16 %v763
    %v899 = vunpack.c.h.b16 %v763
    %v900 = vunpack.c.l.b16 %v764
    %v901 = vunpack.c.h.b16 %v764
    %v902 = vunpack.c.l.b16 %v765
    %v903 = vunpack.c.h.b16 %v765
    %v904 = vunpack.c.l.b16 %v766
    %v905 = vunpack.c.h.b16 %v766
    %v906 = vunpack.c.l.b16 %v767
    %v907 = vunpack.c.h.b16 %v767
    %v908 = vunpack.c.l.b16 %v768
    %v909 = vunpack.c.h.b16 %v768
    %v910 = vunpack.c.l.b16 %v769
    %v911 = vunpack.c.h.b16 %v769
    %v912 = vunpack.c.l.b16 %v770
    %v913 = vunpack.c.h.b16 %v770
    %v914 = vunpack.c.l.b16 %v771
    %v915 = vunpack.c.h.b16 %v771
    %v916 = vunpack.c.l.b16 %v772
    %v917 = vunpack.c.h.b16 %v772
    %v918 = vunpack.c.l.b16 %v773
    %v919 = vunpack.c.h.b16 %v773
    %v920 = vunpack.c.l.b16 %v774
    %v921 = vunpack.c.h.b16 %v774
    %v922 = vunpack.c.l.b16 %v775
    %v923 = vunpack.c.h.b16 %v775
    %v924 = vunpack.c.l.b16 %v776
    %v925 = vunpack.c.h.b16 %v776
    %v926 = vunpack.c.l.b16 %v777
    %v927 = vunpack.c.h.b16 %v777
    %v928 = vunpack.c.l.b16 %v778
    %v929 = vunpack.c.h.b16 %v778
    %v930 = vunpack.c.l.b16 %v779
    %v931 = vunpack.c.h.b16 %v779
    %v932 = vunpack.c.l.b16 %v780
    %v933 = vunpack.c.h.b16 %v780
    %v934 = vunpack.c.l.b16 %v781
    %v935 = vunpack.c.h.b16 %v781
    %v936 = vunpack.c.l.b16 %v782
    %v937 = vunpack.c.h.b16 %v782
    %v938 = vunpack.c.l.b16 %v783
    %v939 = vunpack.c.h.b16 %v783
    %v940 = vunpack.c.l.b16 %v784
    %v941 = vunpack.c.h.b16 %v784
    %v942 = vunpack.c.l.b16 %v785
    %v943 = vunpack.c.h.b16 %v785
    %v944 = vunpack.c.l.b16 %v786
    %v945 = vunpack.c.h.b16 %v786
    %v946 = vunpack.c.l.b16 %v787
    %v947 = vunpack.c.h.b16 %v787
    %v948 = vunpack.c.l.b16 %v788
    %v949 = vunpack.c.h.b16 %v788
    %v950 = vunpack.c.l.b16 %v789
    %v951 = vunpack.c.h.b16 %v789
    %v952 = vunpack.c.l.b16 %v790
    %v953 = vunpack.c.h.b16 %v790
    %v954 = vunpack.c.l.b16 %v791
    %v955 = vunpack.c.h.b16 %v791
    %v956 = vunpack.c.l.b16 %v792
    %v957 = vunpack.c.h.b16 %v792
    %v958 = vunpack.c.l.b16 %v793
    %v959 = vunpack.c.h.b16 %v793
    %v960 = vunpack.c.l.b16 %v794
    %v961 = vunpack.c.h.b16 %v794
    %v962 = vunpack.c.l.b16 %v795
    %v963 = vunpack.c.h.b16 %v795
    %v964 = vunpack.c.l.b16 %v796
    %v965 = vunpack.c.h.b16 %v796
    %v966 = vunpack.c.l.b16 %v797
    %v967 = vunpack.c.h.b16 %v797
    %v968 = vunpack.c.l.b16 %v798
    %v969 = vunpack.c.h.b16 %v798
    %v970 = vunpack.c.l.b16 %v799
    %v971 = vunpack.c.h.b16 %v799
    %v972 = vunpack.c.l.b16 %v800
    %v973 = vunpack.c.h.b16 %v800
    %v974 = vunpack.c.l.b16 %v801
    %v975 = vunpack.c.h.b16 %v801
    %v976 = vunpack.c.l.b16 %v802
    %v977 = vunpack.c.h.b16 %v802
    %v978 = vunpack.c.l.b16 %v803
    %v979 = vunpack.c.h.b16 %v803
    %v980 = vunpack.c.l.b16 %v804
    %v981 = vunpack.c.h.b16 %v804
    %v982 = vunpack.c.l.b16 %v805
    %v983 = vunpack.c.h.b16 %v805
    %v984 = vunpack.c.l.b16 %v806
    %v985 = vunpack.c.h.b16 %v806
    %v986 = vunpack.c.l.b16 %v807
    %v987 = vunpack.c.h.b16 %v807
    %v988 = vunpack.c.l.b16 %v808
    %v989 = vunpack.c.h.b16 %v808
    %v990 = vunpack.c.l.b16 %v809
    %v991 = vunpack.c.h.b16 %v809
    %v992 = vunpack.c.l.b16 %v810
    %v993 = vunpack.c.h.b16 %v810
    %v994 = vunpack.c.l.b16 %v811
    %v995 = vunpack.c.h.b16 %v811
    %v996 = vunpack.c.l.b16 %v812
    %v997 = vunpack.c.h.b16 %v812
    %v998 = vunpack.c.l.b16 %v813
    %v999 = vunpack.c.h.b16 %v813
    %v1000 = vunpack.c.l.b16 %v814
    %v1001 = vunpack.c.h.b16 %v814
    %v1002 = vunpack.c.l.b16 %v815
    %v1003 = vunpack.c.h.b16 %v815
    %v1004 = vunpack.c.l.b16 %v816
    %v1005 = vunpack.c.h.b16 %v816
    %v1006 = vunpack.c.l.b16 %v817
    %v1007 = vunpack.c.h.b16 %v817
    %v1008 = vunpack.c.l.b16 %v818
    %v1009 = vunpack.c.h.b16 %v818
    %v1010 = vunpack.c.l.b16 %v819
    %v1011 = vunpack.c.h.b16 %v819
    %v1012 = vpack.c.b16 %v888, %v884
    %v1013 = vpack.c.b16 %v889, %v885
    %v1014 = vpack.c.b16 %v890, %v886
    %v1015 = vpack.c.b16 %v891, %v887
    %v1016 = vpack.c.b16 %v896, %v892
    %v1017 = vpack.c.b16 %v897, %v893
    %v1018 = vpack.c.b16 %v898, %v894
    %v1019 = vpack.c.b16 %v899, %v895
    %v1020 = vpack.c.b16 %v904, %v900
    %v1021 = vpack.c.b16 %v905, %v901
    %v1022 = vpack.c.b16 %v906, %v902
    %v1023 = vpack.c.b16 %v907, %v903
    %v1024 = vpack.c.b16 %v912, %v908
    %v1025 = vpack.c.b16 %v913, %v909
    %v1026 = vpack.c.b16 %v914, %v910
    %v1027 = vpack.c.b16 %v915, %v911
    %v1028 = vpack.c.b16 %v920, %v916
    %v1029 = vpack.c.b16 %v921, %v917
    %v1030 = vpack.c.b16 %v922, %v918
    %v1031 = vpack.c.b16 %v923, %v919
    %v1032 = vpack.c.b16 %v928, %v924
    %v1033 = vpack.c.b16 %v929, %v925
    %v1034 = vpack.c.b16 %v930, %v926
    %v1035 = vpack.c.b16 %v931, %v927
    %v1036 = vpack.c.b16 %v936, %v932
    %v1037 = vpack.c.b16 %v937, %v933
    %v1038 = vpack.c.b16 %v938, %v934
    %v1039 = vpack.c.b16 %v939, %v935
    %v1040 = vpack.c.b16 %v944, %v940
    %v1041 = vpack.c.b16 %v945, %v941
    %v1042 = vpack.c.b16 %v946, %v942
    %v1043 = vpack.c.b16 %v947, %v943
    %v1044 = vpack.c.b16 %v952, %v948
    %v1045 = vpack.c.b16 %v953, %v949
    %v1046 = vpack.c.b16 %v954, %v950
    %v1047 = vpack.c.b16 %v955, %v951
    %v1048 = vpack.c.b16 %v960, %v956
    %v1049 = vpack.c.b16 %v961, %v957
    %v1050 = vpack.c.b16 %v962, %v958
    %v1051 = vpack.c.b16 %v963, %v959
    %v1052 = vpack.c.b16 %v968, %v964
    %v1053 = vpack.c.b16 %v969, %v965
    %v1054 = vpack.c.b16 %v970, %v966
    %v1055 = vpack.c.b16 %v971, %v967
    %v1056 = vpack.c.b16 %v976, %v972
    %v1057 = vpack.c.b16 %v977, %v973
    %v1058 = vpack.c.b16 %v978, %v974
    %v1059 = vpack.c.b16 %v979, %v975
    %v1060 = vpack.c.b16 %v984, %v980
    %v1061 = vpack.c.b16 %v985, %v981
    %v1062 = vpack.c.b16 %v986, %v982
    %v1063 = vpack.c.b16 %v987, %v983
    %v1064 = vpack.c.b16 %v992, %v988
    %v1065 = vpack.c.b16 %v993, %v989
    %v1066 = vpack.c.b16 %v994, %v990
    %v1067 = vpack.c.b16 %v995, %v991
    %v1068 = vpack.c.b16 %v1000, %v996
    %v1069 = vpack.c.b16 %v1001, %v997
    %v1070 = vpack.c.b16 %v1002, %v998
    %v1071 = vpack.c.b16 %v1003, %v999
    %v1072 = vpack.c.b16 %v1008, %v1004
    %v1073 = vpack.c.b16 %v1009, %v1005
    %v1074 = vpack.c.b16 %v1010, %v1006
    %v1075 = vpack.c.b16 %v1011, %v1007
    %1140 = vmatprep.subr.bf16.mxu0 %v1041
    %1141 = vmatpush1.bf16.msra.mxu0 %v1040
    %1142 = vmatprep.subr.bf16.mxu0 %v1037
    %1143 = vmatpush1.bf16.msra.mxu0 %v1036
    %1144 = vmatprep.subr.bf16.mxu0 %v1033
    %1145 = vmatpush1.bf16.msra.mxu0 %v1032
    %1146 = vmatprep.subr.bf16.mxu0 %v1029
    %1147 = vmatpush1.bf16.msra.mxu0 %v1028
    %1148 = vmatprep.subr.bf16.mxu0 %v1025
    %1149 = vmatpush1.bf16.msra.mxu0 %v1024
    %1150 = vmatprep.subr.bf16.mxu0 %v1021
    %1151 = vmatpush1.bf16.msra.mxu0 %v1020
    %1152 = vmatprep.subr.bf16.mxu0 %v1017
    %1153 = vmatpush1.bf16.msra.mxu0 %v1016
    %1154 = vmatprep.subr.bf16.mxu0 %v1013
    %1155 = vmatpush1.bf16.msra.mxu0 %v1012
    %1156 = vmatprep.subr.bf16.mxu0 %v1073
    %1157 = vmatpush2.bf16.msra.mxu0 %v1072
    %1158 = vmatprep.subr.bf16.mxu0 %v1069
    %1159 = vmatpush2.bf16.msra.mxu0 %v1068
    %1160 = vmatprep.subr.bf16.mxu0 %v1065
    %1161 = vmatpush2.bf16.msra.mxu0 %v1064
    %1162 = vmatprep.subr.bf16.mxu0 %v1061
    %1163 = vmatpush2.bf16.msra.mxu0 %v1060
    %1164 = vmatprep.subr.bf16.mxu0 %v1057
    %1165 = vmatpush2.bf16.msra.mxu0 %v1056
    %1166 = vmatprep.subr.bf16.mxu0 %v1053
    %1167 = vmatpush2.bf16.msra.mxu0 %v1052
    %1168 = vmatprep.subr.bf16.mxu0 %v1049
    %1169 = vmatpush2.bf16.msra.mxu0 %v1048
    %1170 = vmatprep.subr.bf16.mxu0 %v1045
    %1171 = vmatpush2.bf16.msra.mxu0 %v1044
    %1172 = vmatprep.mubr.bf16.mxu0 %v725
    %1173 = vmatmul.mubr.bf16.gmra.mxu0 %v724
    %v1174 = vpop.f32.mrf.mxu0
    %v1175 = vadd.f32 0.0, %v1174
    %v1176 = vpop.f32.mrf.mxu0
    %v1177 = vadd.f32 0.0, %v1176
    %v1178 = vpop.f32.mrf.mxu0
    %v1179 = vadd.f32 0.0, %v1178
    %v1180 = vpop.f32.mrf.mxu0
    %v1181 = vadd.f32 0.0, %v1180
    %1182 = vmatprep.mubr.bf16.mxu0 %v727
    %1183 = vmatmul.mubr.bf16.gmra.mxu0 %v726
    %v1184 = vpop.f32.mrf.mxu0
    %v1185 = vadd.f32 0.0, %v1184
    %v1186 = vpop.f32.mrf.mxu0
    %v1187 = vadd.f32 0.0, %v1186
    %v1188 = vpop.f32.mrf.mxu0
    %v1189 = vadd.f32 0.0, %v1188
    %v1190 = vpop.f32.mrf.mxu0
    %v1191 = vadd.f32 0.0, %v1190
    %1192 = vmatprep.mubr.bf16.mxu0 %v729
    %1193 = vmatmul.mubr.bf16.gmra.mxu0 %v728
    %v1194 = vpop.f32.mrf.mxu0
    %v1195 = vadd.f32 0.0, %v1194
    %v1196 = vpop.f32.mrf.mxu0
    %v1197 = vadd.f32 0.0, %v1196
    %v1198 = vpop.f32.mrf.mxu0
    %v1199 = vadd.f32 0.0, %v1198
    %v1200 = vpop.f32.mrf.mxu0
    %v1201 = vadd.f32 0.0, %v1200
    %1202 = vmatprep.mubr.bf16.mxu0 %v731
    %1203 = vmatmul.mubr.bf16.gmra.mxu0 %v730
    %v1204 = vpop.f32.mrf.mxu0
    %v1205 = vadd.f32 0.0, %v1204
    %v1206 = vpop.f32.mrf.mxu0
    %v1207 = vadd.f32 0.0, %v1206
    %v1208 = vpop.f32.mrf.mxu0
    %v1209 = vadd.f32 0.0, %v1208
    %v1210 = vpop.f32.mrf.mxu0
    %v1211 = vadd.f32 0.0, %v1210
    %1212 = vmatprep.mubr.bf16.mxu0 %v733
    %1213 = vmatmul.mubr.bf16.gmra.mxu0 %v732
    %v1214 = vpop.f32.mrf.mxu0
    %v1215 = vadd.f32 0.0, %v1214
    %v1216 = vpop.f32.mrf.mxu0
    %v1217 = vadd.f32 0.0, %v1216
    %v1218 = vpop.f32.mrf.mxu0
    %v1219 = vadd.f32 0.0, %v1218
    %v1220 = vpop.f32.mrf.mxu0
    %v1221 = vadd.f32 0.0, %v1220
    %1222 = vmatprep.mubr.bf16.mxu0 %v735
    %1223 = vmatmul.mubr.bf16.gmra.mxu0 %v734
    %v1224 = vpop.f32.mrf.mxu0
    %v1225 = vadd.f32 0.0, %v1224
    %v1226 = vpop.f32.mrf.mxu0
    %v1227 = vadd.f32 0.0, %v1226
    %v1228 = vpop.f32.mrf.mxu0
    %v1229 = vadd.f32 0.0, %v1228
    %v1230 = vpop.f32.mrf.mxu0
    %v1231 = vadd.f32 0.0, %v1230
    %1232 = vmatprep.mubr.bf16.mxu0 %v737
    %1233 = vmatmul.mubr.bf16.gmra.mxu0 %v736
    %v1234 = vpop.f32.mrf.mxu0
    %v1235 = vadd.f32 0.0, %v1234
    %v1236 = vpop.f32.mrf.mxu0
    %v1237 = vadd.f32 0.0, %v1236
    %v1238 = vpop.f32.mrf.mxu0
    %v1239 = vadd.f32 0.0, %v1238
    %v1240 = vpop.f32.mrf.mxu0
    %v1241 = vadd.f32 0.0, %v1240
    %1242 = vmatprep.mubr.bf16.mxu0 %v739
    %1243 = vmatmul.mubr.bf16.gmra.mxu0 %v738
    %v1244 = vpop.f32.mrf.mxu0
    %v1245 = vadd.f32 0.0, %v1244
    %v1246 = vpop.f32.mrf.mxu0
    %v1247 = vadd.f32 0.0, %v1246
    %v1248 = vpop.f32.mrf.mxu0
    %v1249 = vadd.f32 0.0, %v1248
    %v1250 = vpop.f32.mrf.mxu0
    %v1251 = vadd.f32 0.0, %v1250
    %1252 = vmatprep.mubr.bf16.mxu0 %v741
    %1253 = vmatmul.mubr.bf16.gmra.mxu0 %v740
    %v1254 = vpop.f32.mrf.mxu0
    %v1255 = vadd.f32 0.0, %v1254
    %v1256 = vpop.f32.mrf.mxu0
    %v1257 = vadd.f32 0.0, %v1256
    %v1258 = vpop.f32.mrf.mxu0
    %v1259 = vadd.f32 0.0, %v1258
    %v1260 = vpop.f32.mrf.mxu0
    %v1261 = vadd.f32 0.0, %v1260
    %1262 = vmatprep.mubr.bf16.mxu0 %v743
    %1263 = vmatmul.mubr.bf16.gmra.mxu0 %v742
    %v1264 = vpop.f32.mrf.mxu0
    %v1265 = vadd.f32 0.0, %v1264
    %v1266 = vpop.f32.mrf.mxu0
    %v1267 = vadd.f32 0.0, %v1266
    %v1268 = vpop.f32.mrf.mxu0
    %v1269 = vadd.f32 0.0, %v1268
    %v1270 = vpop.f32.mrf.mxu0
    %v1271 = vadd.f32 0.0, %v1270
    %1272 = vmatprep.mubr.bf16.mxu0 %v745
    %1273 = vmatmul.mubr.bf16.gmra.mxu0 %v744
    %v1274 = vpop.f32.mrf.mxu0
    %v1275 = vadd.f32 0.0, %v1274
    %v1276 = vpop.f32.mrf.mxu0
    %v1277 = vadd.f32 0.0, %v1276
    %v1278 = vpop.f32.mrf.mxu0
    %v1279 = vadd.f32 0.0, %v1278
    %v1280 = vpop.f32.mrf.mxu0
    %v1281 = vadd.f32 0.0, %v1280
    %1282 = vmatprep.mubr.bf16.mxu0 %v747
    %1283 = vmatmul.mubr.bf16.gmra.mxu0 %v746
    %v1284 = vpop.f32.mrf.mxu0
    %v1285 = vadd.f32 0.0, %v1284
    %v1286 = vpop.f32.mrf.mxu0
    %v1287 = vadd.f32 0.0, %v1286
    %v1288 = vpop.f32.mrf.mxu0
    %v1289 = vadd.f32 0.0, %v1288
    %v1290 = vpop.f32.mrf.mxu0
    %v1291 = vadd.f32 0.0, %v1290
    %1292 = vmatprep.mubr.bf16.mxu0 %v749
    %1293 = vmatmul.mubr.bf16.gmra.mxu0 %v748
    %v1294 = vpop.f32.mrf.mxu0
    %v1295 = vadd.f32 0.0, %v1294
    %v1296 = vpop.f32.mrf.mxu0
    %v1297 = vadd.f32 0.0, %v1296
    %v1298 = vpop.f32.mrf.mxu0
    %v1299 = vadd.f32 0.0, %v1298
    %v1300 = vpop.f32.mrf.mxu0
    %v1301 = vadd.f32 0.0, %v1300
    %1302 = vmatprep.mubr.bf16.mxu0 %v751
    %1303 = vmatmul.mubr.bf16.gmra.mxu0 %v750
    %v1304 = vpop.f32.mrf.mxu0
    %v1305 = vadd.f32 0.0, %v1304
    %v1306 = vpop.f32.mrf.mxu0
    %v1307 = vadd.f32 0.0, %v1306
    %v1308 = vpop.f32.mrf.mxu0
    %v1309 = vadd.f32 0.0, %v1308
    %v1310 = vpop.f32.mrf.mxu0
    %v1311 = vadd.f32 0.0, %v1310
    %1312 = vmatprep.mubr.bf16.mxu0 %v753
    %1313 = vmatmul.mubr.bf16.gmra.mxu0 %v752
    %v1314 = vpop.f32.mrf.mxu0
    %v1315 = vadd.f32 0.0, %v1314
    %v1316 = vpop.f32.mrf.mxu0
    %v1317 = vadd.f32 0.0, %v1316
    %v1318 = vpop.f32.mrf.mxu0
    %v1319 = vadd.f32 0.0, %v1318
    %v1320 = vpop.f32.mrf.mxu0
    %v1321 = vadd.f32 0.0, %v1320
    %1322 = vmatprep.mubr.bf16.mxu0 %v755
    %1323 = vmatmul.mubr.bf16.gmra.mxu0 %v754
    %v1324 = vpop.f32.mrf.mxu0
    %v1325 = vadd.f32 0.0, %v1324
    %v1326 = vpop.f32.mrf.mxu0
    %v1327 = vadd.f32 0.0, %v1326
    %v1328 = vpop.f32.mrf.mxu0
    %v1329 = vadd.f32 0.0, %v1328
    %v1330 = vpop.f32.mrf.mxu0
    %v1331 = vadd.f32 0.0, %v1330
    %1332 = vdwg.mxu0
    %1333 = vmatprep.subr.bf16.mxu0 %v1043
    %1334 = vmatpush1.bf16.msra.mxu0 %v1042
    %1335 = vmatprep.subr.bf16.mxu0 %v1039
    %1336 = vmatpush1.bf16.msra.mxu0 %v1038
    %1337 = vmatprep.subr.bf16.mxu0 %v1035
    %1338 = vmatpush1.bf16.msra.mxu0 %v1034
    %1339 = vmatprep.subr.bf16.mxu0 %v1031
    %1340 = vmatpush1.bf16.msra.mxu0 %v1030
    %1341 = vmatprep.subr.bf16.mxu0 %v1027
    %1342 = vmatpush1.bf16.msra.mxu0 %v1026
    %1343 = vmatprep.subr.bf16.mxu0 %v1023
    %1344 = vmatpush1.bf16.msra.mxu0 %v1022
    %1345 = vmatprep.subr.bf16.mxu0 %v1019
    %1346 = vmatpush1.bf16.msra.mxu0 %v1018
    %1347 = vmatprep.subr.bf16.mxu0 %v1015
    %1348 = vmatpush1.bf16.msra.mxu0 %v1014
    %1349 = vmatprep.subr.bf16.mxu0 %v1075
    %1350 = vmatpush2.bf16.msra.mxu0 %v1074
    %1351 = vmatprep.subr.bf16.mxu0 %v1071
    %1352 = vmatpush2.bf16.msra.mxu0 %v1070
    %1353 = vmatprep.subr.bf16.mxu0 %v1067
    %1354 = vmatpush2.bf16.msra.mxu0 %v1066
    %1355 = vmatprep.subr.bf16.mxu0 %v1063
    %1356 = vmatpush2.bf16.msra.mxu0 %v1062
    %1357 = vmatprep.subr.bf16.mxu0 %v1059
    %1358 = vmatpush2.bf16.msra.mxu0 %v1058
    %1359 = vmatprep.subr.bf16.mxu0 %v1055
    %1360 = vmatpush2.bf16.msra.mxu0 %v1054
    %1361 = vmatprep.subr.bf16.mxu0 %v1051
    %1362 = vmatpush2.bf16.msra.mxu0 %v1050
    %1363 = vmatprep.subr.bf16.mxu0 %v1047
    %1364 = vmatpush2.bf16.msra.mxu0 %v1046
    %1365 = vmatprep.mubr.bf16.mxu0 %v725
    %1366 = vmatmul.mubr.bf16.gmra.mxu0 %v724
    %v1367 = vpop.f32.mrf.mxu0
    %v1368 = vadd.f32 0.0, %v1367
    %v1369 = vpop.f32.mrf.mxu0
    %v1370 = vadd.f32 0.0, %v1369
    %v1371 = vpop.f32.mrf.mxu0
    %v1372 = vadd.f32 0.0, %v1371
    %v1373 = vpop.f32.mrf.mxu0
    %v1374 = vadd.f32 0.0, %v1373
    %1375 = vmatprep.mubr.bf16.mxu0 %v727
    %1376 = vmatmul.mubr.bf16.gmra.mxu0 %v726
    %v1377 = vpop.f32.mrf.mxu0
    %v1378 = vadd.f32 0.0, %v1377
    %v1379 = vpop.f32.mrf.mxu0
    %v1380 = vadd.f32 0.0, %v1379
    %v1381 = vpop.f32.mrf.mxu0
    %v1382 = vadd.f32 0.0, %v1381
    %v1383 = vpop.f32.mrf.mxu0
    %v1384 = vadd.f32 0.0, %v1383
    %1385 = vmatprep.mubr.bf16.mxu0 %v729
    %1386 = vmatmul.mubr.bf16.gmra.mxu0 %v728
    %v1387 = vpop.f32.mrf.mxu0
    %v1388 = vadd.f32 0.0, %v1387
    %v1389 = vpop.f32.mrf.mxu0
    %v1390 = vadd.f32 0.0, %v1389
    %v1391 = vpop.f32.mrf.mxu0
    %v1392 = vadd.f32 0.0, %v1391
    %v1393 = vpop.f32.mrf.mxu0
    %v1394 = vadd.f32 0.0, %v1393
    %1395 = vmatprep.mubr.bf16.mxu0 %v731
    %1396 = vmatmul.mubr.bf16.gmra.mxu0 %v730
    %v1397 = vpop.f32.mrf.mxu0
    %v1398 = vadd.f32 0.0, %v1397
    %v1399 = vpop.f32.mrf.mxu0
    %v1400 = vadd.f32 0.0, %v1399
    %v1401 = vpop.f32.mrf.mxu0
    %v1402 = vadd.f32 0.0, %v1401
    %v1403 = vpop.f32.mrf.mxu0
    %v1404 = vadd.f32 0.0, %v1403
    %1405 = vmatprep.mubr.bf16.mxu0 %v733
    %1406 = vmatmul.mubr.bf16.gmra.mxu0 %v732
    %v1407 = vpop.f32.mrf.mxu0
    %v1408 = vadd.f32 0.0, %v1407
    %v1409 = vpop.f32.mrf.mxu0
    %v1410 = vadd.f32 0.0, %v1409
    %v1411 = vpop.f32.mrf.mxu0
    %v1412 = vadd.f32 0.0, %v1411
    %v1413 = vpop.f32.mrf.mxu0
    %v1414 = vadd.f32 0.0, %v1413
    %1415 = vmatprep.mubr.bf16.mxu0 %v735
    %1416 = vmatmul.mubr.bf16.gmra.mxu0 %v734
    %v1417 = vpop.f32.mrf.mxu0
    %v1418 = vadd.f32 0.0, %v1417
    %v1419 = vpop.f32.mrf.mxu0
    %v1420 = vadd.f32 0.0, %v1419
    %v1421 = vpop.f32.mrf.mxu0
    %v1422 = vadd.f32 0.0, %v1421
    %v1423 = vpop.f32.mrf.mxu0
    %v1424 = vadd.f32 0.0, %v1423
    %1425 = vmatprep.mubr.bf16.mxu0 %v737
    %1426 = vmatmul.mubr.bf16.gmra.mxu0 %v736
    %v1427 = vpop.f32.mrf.mxu0
    %v1428 = vadd.f32 0.0, %v1427
    %v1429 = vpop.f32.mrf.mxu0
    %v1430 = vadd.f32 0.0, %v1429
    %v1431 = vpop.f32.mrf.mxu0
    %v1432 = vadd.f32 0.0, %v1431
    %v1433 = vpop.f32.mrf.mxu0
    %v1434 = vadd.f32 0.0, %v1433
    %1435 = vmatprep.mubr.bf16.mxu0 %v739
    %1436 = vmatmul.mubr.bf16.gmra.mxu0 %v738
    %v1437 = vpop.f32.mrf.mxu0
    %v1438 = vadd.f32 0.0, %v1437
    %v1439 = vpop.f32.mrf.mxu0
    %v1440 = vadd.f32 0.0, %v1439
    %v1441 = vpop.f32.mrf.mxu0
    %v1442 = vadd.f32 0.0, %v1441
    %v1443 = vpop.f32.mrf.mxu0
    %v1444 = vadd.f32 0.0, %v1443
    %1445 = vmatprep.mubr.bf16.mxu0 %v741
    %1446 = vmatmul.mubr.bf16.gmra.mxu0 %v740
    %v1447 = vpop.f32.mrf.mxu0
    %v1448 = vadd.f32 0.0, %v1447
    %v1449 = vpop.f32.mrf.mxu0
    %v1450 = vadd.f32 0.0, %v1449
    %v1451 = vpop.f32.mrf.mxu0
    %v1452 = vadd.f32 0.0, %v1451
    %v1453 = vpop.f32.mrf.mxu0
    %v1454 = vadd.f32 0.0, %v1453
    %1455 = vmatprep.mubr.bf16.mxu0 %v743
    %1456 = vmatmul.mubr.bf16.gmra.mxu0 %v742
    %v1457 = vpop.f32.mrf.mxu0
    %v1458 = vadd.f32 0.0, %v1457
    %v1459 = vpop.f32.mrf.mxu0
    %v1460 = vadd.f32 0.0, %v1459
    %v1461 = vpop.f32.mrf.mxu0
    %v1462 = vadd.f32 0.0, %v1461
    %v1463 = vpop.f32.mrf.mxu0
    %v1464 = vadd.f32 0.0, %v1463
    %1465 = vmatprep.mubr.bf16.mxu0 %v745
    %1466 = vmatmul.mubr.bf16.gmra.mxu0 %v744
    %v1467 = vpop.f32.mrf.mxu0
    %v1468 = vadd.f32 0.0, %v1467
    %v1469 = vpop.f32.mrf.mxu0
    %v1470 = vadd.f32 0.0, %v1469
    %v1471 = vpop.f32.mrf.mxu0
    %v1472 = vadd.f32 0.0, %v1471
    %v1473 = vpop.f32.mrf.mxu0
    %v1474 = vadd.f32 0.0, %v1473
    %1475 = vmatprep.mubr.bf16.mxu0 %v747
    %1476 = vmatmul.mubr.bf16.gmra.mxu0 %v746
    %v1477 = vpop.f32.mrf.mxu0
    %v1478 = vadd.f32 0.0, %v1477
    %v1479 = vpop.f32.mrf.mxu0
    %v1480 = vadd.f32 0.0, %v1479
    %v1481 = vpop.f32.mrf.mxu0
    %v1482 = vadd.f32 0.0, %v1481
    %v1483 = vpop.f32.mrf.mxu0
    %v1484 = vadd.f32 0.0, %v1483
    %1485 = vmatprep.mubr.bf16.mxu0 %v749
    %1486 = vmatmul.mubr.bf16.gmra.mxu0 %v748
    %v1487 = vpop.f32.mrf.mxu0
    %v1488 = vadd.f32 0.0, %v1487
    %v1489 = vpop.f32.mrf.mxu0
    %v1490 = vadd.f32 0.0, %v1489
    %v1491 = vpop.f32.mrf.mxu0
    %v1492 = vadd.f32 0.0, %v1491
    %v1493 = vpop.f32.mrf.mxu0
    %v1494 = vadd.f32 0.0, %v1493
    %1495 = vmatprep.mubr.bf16.mxu0 %v751
    %1496 = vmatmul.mubr.bf16.gmra.mxu0 %v750
    %v1497 = vpop.f32.mrf.mxu0
    %v1498 = vadd.f32 0.0, %v1497
    %v1499 = vpop.f32.mrf.mxu0
    %v1500 = vadd.f32 0.0, %v1499
    %v1501 = vpop.f32.mrf.mxu0
    %v1502 = vadd.f32 0.0, %v1501
    %v1503 = vpop.f32.mrf.mxu0
    %v1504 = vadd.f32 0.0, %v1503
    %1505 = vmatprep.mubr.bf16.mxu0 %v753
    %1506 = vmatmul.mubr.bf16.gmra.mxu0 %v752
    %v1507 = vpop.f32.mrf.mxu0
    %v1508 = vadd.f32 0.0, %v1507
    %v1509 = vpop.f32.mrf.mxu0
    %v1510 = vadd.f32 0.0, %v1509
    %v1511 = vpop.f32.mrf.mxu0
    %v1512 = vadd.f32 0.0, %v1511
    %v1513 = vpop.f32.mrf.mxu0
    %v1514 = vadd.f32 0.0, %v1513
    %1515 = vmatprep.mubr.bf16.mxu0 %v755
    %1516 = vmatmul.mubr.bf16.gmra.mxu0 %v754
    %v1517 = vpop.f32.mrf.mxu0
    %v1518 = vadd.f32 0.0, %v1517
    %v1519 = vpop.f32.mrf.mxu0
    %v1520 = vadd.f32 0.0, %v1519
    %v1521 = vpop.f32.mrf.mxu0
    %v1522 = vadd.f32 0.0, %v1521
    %v1523 = vpop.f32.mrf.mxu0
    %v1524 = vadd.f32 0.0, %v1523
    %1525 = vdwg.mxu0
    %v1526 = vpack.c.bf16 %v1179, %v1175
    %v1527 = vpack.c.bf16 %v1181, %v1177
    %v1528 = vpack.c.bf16 %v1372, %v1368
    %v1529 = vpack.c.bf16 %v1374, %v1370
    %v1530 = vpack.c.bf16 %v1189, %v1185
    %v1531 = vpack.c.bf16 %v1191, %v1187
    %v1532 = vpack.c.bf16 %v1382, %v1378
    %v1533 = vpack.c.bf16 %v1384, %v1380
    %v1534 = vpack.c.bf16 %v1199, %v1195
    %v1535 = vpack.c.bf16 %v1201, %v1197
    %v1536 = vpack.c.bf16 %v1392, %v1388
    %v1537 = vpack.c.bf16 %v1394, %v1390
    %v1538 = vpack.c.bf16 %v1209, %v1205
    %v1539 = vpack.c.bf16 %v1211, %v1207
    %v1540 = vpack.c.bf16 %v1402, %v1398
    %v1541 = vpack.c.bf16 %v1404, %v1400
    %v1542 = vpack.c.bf16 %v1219, %v1215
    %v1543 = vpack.c.bf16 %v1221, %v1217
    %v1544 = vpack.c.bf16 %v1412, %v1408
    %v1545 = vpack.c.bf16 %v1414, %v1410
    %v1546 = vpack.c.bf16 %v1229, %v1225
    %v1547 = vpack.c.bf16 %v1231, %v1227
    %v1548 = vpack.c.bf16 %v1422, %v1418
    %v1549 = vpack.c.bf16 %v1424, %v1420
    %v1550 = vpack.c.bf16 %v1239, %v1235
    %v1551 = vpack.c.bf16 %v1241, %v1237
    %v1552 = vpack.c.bf16 %v1432, %v1428
    %v1553 = vpack.c.bf16 %v1434, %v1430
    %v1554 = vpack.c.bf16 %v1249, %v1245
    %v1555 = vpack.c.bf16 %v1251, %v1247
    %v1556 = vpack.c.bf16 %v1442, %v1438
    %v1557 = vpack.c.bf16 %v1444, %v1440
    %v1558 = vpack.c.bf16 %v1259, %v1255
    %v1559 = vpack.c.bf16 %v1261, %v1257
    %v1560 = vpack.c.bf16 %v1452, %v1448
    %v1561 = vpack.c.bf16 %v1454, %v1450
    %v1562 = vpack.c.bf16 %v1269, %v1265
    %v1563 = vpack.c.bf16 %v1271, %v1267
    %v1564 = vpack.c.bf16 %v1462, %v1458
    %v1565 = vpack.c.bf16 %v1464, %v1460
    %v1566 = vpack.c.bf16 %v1279, %v1275
    %v1567 = vpack.c.bf16 %v1281, %v1277
    %v1568 = vpack.c.bf16 %v1472, %v1468
    %v1569 = vpack.c.bf16 %v1474, %v1470
    %v1570 = vpack.c.bf16 %v1289, %v1285
    %v1571 = vpack.c.bf16 %v1291, %v1287
    %v1572 = vpack.c.bf16 %v1482, %v1478
    %v1573 = vpack.c.bf16 %v1484, %v1480
    %v1574 = vpack.c.bf16 %v1299, %v1295
    %v1575 = vpack.c.bf16 %v1301, %v1297
    %v1576 = vpack.c.bf16 %v1492, %v1488
    %v1577 = vpack.c.bf16 %v1494, %v1490
    %v1578 = vpack.c.bf16 %v1309, %v1305
    %v1579 = vpack.c.bf16 %v1311, %v1307
    %v1580 = vpack.c.bf16 %v1502, %v1498
    %v1581 = vpack.c.bf16 %v1504, %v1500
    %v1582 = vpack.c.bf16 %v1319, %v1315
    %v1583 = vpack.c.bf16 %v1321, %v1317
    %v1584 = vpack.c.bf16 %v1512, %v1508
    %v1585 = vpack.c.bf16 %v1514, %v1510
    %v1586 = vpack.c.bf16 %v1329, %v1325
    %v1587 = vpack.c.bf16 %v1331, %v1327
    %v1588 = vpack.c.bf16 %v1522, %v1518
    %v1589 = vpack.c.bf16 %v1524, %v1520
    %v1654 = vunpack.c.l.b16 %v1526
    %v1655 = vunpack.c.l.b16 %v1527
    %v1656 = vunpack.c.l.b16 %v1528
    %v1657 = vunpack.c.l.b16 %v1529
    %v1658 = vunpack.c.h.b16 %v1526
    %v1659 = vunpack.c.h.b16 %v1527
    %v1660 = vunpack.c.h.b16 %v1528
    %v1661 = vunpack.c.h.b16 %v1529
    %v1662 = vunpack.c.l.b16 %v1530
    %v1663 = vunpack.c.l.b16 %v1531
    %v1664 = vunpack.c.l.b16 %v1532
    %v1665 = vunpack.c.l.b16 %v1533
    %v1666 = vunpack.c.h.b16 %v1530
    %v1667 = vunpack.c.h.b16 %v1531
    %v1668 = vunpack.c.h.b16 %v1532
    %v1669 = vunpack.c.h.b16 %v1533
    %v1670 = vunpack.c.l.b16 %v1534
    %v1671 = vunpack.c.l.b16 %v1535
    %v1672 = vunpack.c.l.b16 %v1536
    %v1673 = vunpack.c.l.b16 %v1537
    %v1674 = vunpack.c.h.b16 %v1534
    %v1675 = vunpack.c.h.b16 %v1535
    %v1676 = vunpack.c.h.b16 %v1536
    %v1677 = vunpack.c.h.b16 %v1537
    %v1678 = vunpack.c.l.b16 %v1538
    %v1679 = vunpack.c.l.b16 %v1539
    %v1680 = vunpack.c.l.b16 %v1540
    %v1681 = vunpack.c.l.b16 %v1541
    %v1682 = vunpack.c.h.b16 %v1538
    %v1683 = vunpack.c.h.b16 %v1539
    %v1684 = vunpack.c.h.b16 %v1540
    %v1685 = vunpack.c.h.b16 %v1541
    %v1686 = vunpack.c.l.b16 %v1542
    %v1687 = vunpack.c.l.b16 %v1543
    %v1688 = vunpack.c.l.b16 %v1544
    %v1689 = vunpack.c.l.b16 %v1545
    %v1690 = vunpack.c.h.b16 %v1542
    %v1691 = vunpack.c.h.b16 %v1543
    %v1692 = vunpack.c.h.b16 %v1544
    %v1693 = vunpack.c.h.b16 %v1545
    %v1694 = vunpack.c.l.b16 %v1546
    %v1695 = vunpack.c.l.b16 %v1547
    %v1696 = vunpack.c.l.b16 %v1548
    %v1697 = vunpack.c.l.b16 %v1549
    %v1698 = vunpack.c.h.b16 %v1546
    %v1699 = vunpack.c.h.b16 %v1547
    %v1700 = vunpack.c.h.b16 %v1548
    %v1701 = vunpack.c.h.b16 %v1549
    %v1702 = vunpack.c.l.b16 %v1550
    %v1703 = vunpack.c.l.b16 %v1551
    %v1704 = vunpack.c.l.b16 %v1552
    %v1705 = vunpack.c.l.b16 %v1553
    %v1706 = vunpack.c.h.b16 %v1550
    %v1707 = vunpack.c.h.b16 %v1551
    %v1708 = vunpack.c.h.b16 %v1552
    %v1709 = vunpack.c.h.b16 %v1553
    %v1710 = vunpack.c.l.b16 %v1554
    %v1711 = vunpack.c.l.b16 %v1555
    %v1712 = vunpack.c.l.b16 %v1556
    %v1713 = vunpack.c.l.b16 %v1557
    %v1714 = vunpack.c.h.b16 %v1554
    %v1715 = vunpack.c.h.b16 %v1555
    %v1716 = vunpack.c.h.b16 %v1556
    %v1717 = vunpack.c.h.b16 %v1557
    %v1718 = vunpack.c.l.b16 %v1558
    %v1719 = vunpack.c.l.b16 %v1559
    %v1720 = vunpack.c.l.b16 %v1560
    %v1721 = vunpack.c.l.b16 %v1561
    %v1722 = vunpack.c.h.b16 %v1558
    %v1723 = vunpack.c.h.b16 %v1559
    %v1724 = vunpack.c.h.b16 %v1560
    %v1725 = vunpack.c.h.b16 %v1561
    %v1726 = vunpack.c.l.b16 %v1562
    %v1727 = vunpack.c.l.b16 %v1563
    %v1728 = vunpack.c.l.b16 %v1564
    %v1729 = vunpack.c.l.b16 %v1565
    %v1730 = vunpack.c.h.b16 %v1562
    %v1731 = vunpack.c.h.b16 %v1563
    %v1732 = vunpack.c.h.b16 %v1564
    %v1733 = vunpack.c.h.b16 %v1565
    %v1734 = vunpack.c.l.b16 %v1566
    %v1735 = vunpack.c.l.b16 %v1567
    %v1736 = vunpack.c.l.b16 %v1568
    %v1737 = vunpack.c.l.b16 %v1569
    %v1738 = vunpack.c.h.b16 %v1566
    %v1739 = vunpack.c.h.b16 %v1567
    %v1740 = vunpack.c.h.b16 %v1568
    %v1741 = vunpack.c.h.b16 %v1569
    %v1742 = vunpack.c.l.b16 %v1570
    %v1743 = vunpack.c.l.b16 %v1571
    %v1744 = vunpack.c.l.b16 %v1572
    %v1745 = vunpack.c.l.b16 %v1573
    %v1746 = vunpack.c.h.b16 %v1570
    %v1747 = vunpack.c.h.b16 %v1571
    %v1748 = vunpack.c.h.b16 %v1572
    %v1749 = vunpack.c.h.b16 %v1573
    %v1750 = vunpack.c.l.b16 %v1574
    %v1751 = vunpack.c.l.b16 %v1575
    %v1752 = vunpack.c.l.b16 %v1576
    %v1753 = vunpack.c.l.b16 %v1577
    %v1754 = vunpack.c.h.b16 %v1574
    %v1755 = vunpack.c.h.b16 %v1575
    %v1756 = vunpack.c.h.b16 %v1576
    %v1757 = vunpack.c.h.b16 %v1577
    %v1758 = vunpack.c.l.b16 %v1578
    %v1759 = vunpack.c.l.b16 %v1579
    %v1760 = vunpack.c.l.b16 %v1580
    %v1761 = vunpack.c.l.b16 %v1581
    %v1762 = vunpack.c.h.b16 %v1578
    %v1763 = vunpack.c.h.b16 %v1579
    %v1764 = vunpack.c.h.b16 %v1580
    %v1765 = vunpack.c.h.b16 %v1581
    %v1766 = vunpack.c.l.b16 %v1582
    %v1767 = vunpack.c.l.b16 %v1583
    %v1768 = vunpack.c.l.b16 %v1584
    %v1769 = vunpack.c.l.b16 %v1585
    %v1770 = vunpack.c.h.b16 %v1582
    %v1771 = vunpack.c.h.b16 %v1583
    %v1772 = vunpack.c.h.b16 %v1584
    %v1773 = vunpack.c.h.b16 %v1585
    %v1774 = vunpack.c.l.b16 %v1586
    %v1775 = vunpack.c.l.b16 %v1587
    %v1776 = vunpack.c.l.b16 %v1588
    %v1777 = vunpack.c.l.b16 %v1589
    %v1778 = vunpack.c.h.b16 %v1586
    %v1779 = vunpack.c.h.b16 %v1587
    %v1780 = vunpack.c.h.b16 %v1588
    %v1781 = vunpack.c.h.b16 %v1589
    %v1782 = vpack.c.b16 %v1655, %v1654
    %v1783 = vpack.c.b16 %v1657, %v1656
    %v1784 = vpack.c.b16 %v1659, %v1658
    %v1785 = vpack.c.b16 %v1661, %v1660
    %v1786 = vpack.c.b16 %v1663, %v1662
    %v1787 = vpack.c.b16 %v1665, %v1664
    %v1788 = vpack.c.b16 %v1667, %v1666
    %v1789 = vpack.c.b16 %v1669, %v1668
    %v1790 = vpack.c.b16 %v1671, %v1670
    %v1791 = vpack.c.b16 %v1673, %v1672
    %v1792 = vpack.c.b16 %v1675, %v1674
    %v1793 = vpack.c.b16 %v1677, %v1676
    %v1794 = vpack.c.b16 %v1679, %v1678
    %v1795 = vpack.c.b16 %v1681, %v1680
    %v1796 = vpack.c.b16 %v1683, %v1682
    %v1797 = vpack.c.b16 %v1685, %v1684
    %v1798 = vpack.c.b16 %v1687, %v1686
    %v1799 = vpack.c.b16 %v1689, %v1688
    %v1800 = vpack.c.b16 %v1691, %v1690
    %v1801 = vpack.c.b16 %v1693, %v1692
    %v1802 = vpack.c.b16 %v1695, %v1694
    %v1803 = vpack.c.b16 %v1697, %v1696
    %v1804 = vpack.c.b16 %v1699, %v1698
    %v1805 = vpack.c.b16 %v1701, %v1700
    %v1806 = vpack.c.b16 %v1703, %v1702
    %v1807 = vpack.c.b16 %v1705, %v1704
    %v1808 = vpack.c.b16 %v1707, %v1706
    %v1809 = vpack.c.b16 %v1709, %v1708
    %v1810 = vpack.c.b16 %v1711, %v1710
    %v1811 = vpack.c.b16 %v1713, %v1712
    %v1812 = vpack.c.b16 %v1715, %v1714
    %v1813 = vpack.c.b16 %v1717, %v1716
    %v1814 = vpack.c.b16 %v1719, %v1718
    %v1815 = vpack.c.b16 %v1721, %v1720
    %v1816 = vpack.c.b16 %v1723, %v1722
    %v1817 = vpack.c.b16 %v1725, %v1724
    %v1818 = vpack.c.b16 %v1727, %v1726
    %v1819 = vpack.c.b16 %v1729, %v1728
    %v1820 = vpack.c.b16 %v1731, %v1730
    %v1821 = vpack.c.b16 %v1733, %v1732
    %v1822 = vpack.c.b16 %v1735, %v1734
    %v1823 = vpack.c.b16 %v1737, %v1736
    %v1824 = vpack.c.b16 %v1739, %v1738
    %v1825 = vpack.c.b16 %v1741, %v1740
    %v1826 = vpack.c.b16 %v1743, %v1742
    %v1827 = vpack.c.b16 %v1745, %v1744
    %v1828 = vpack.c.b16 %v1747, %v1746
    %v1829 = vpack.c.b16 %v1749, %v1748
    %v1830 = vpack.c.b16 %v1751, %v1750
    %v1831 = vpack.c.b16 %v1753, %v1752
    %v1832 = vpack.c.b16 %v1755, %v1754
    %v1833 = vpack.c.b16 %v1757, %v1756
    %v1834 = vpack.c.b16 %v1759, %v1758
    %v1835 = vpack.c.b16 %v1761, %v1760
    %v1836 = vpack.c.b16 %v1763, %v1762
    %v1837 = vpack.c.b16 %v1765, %v1764
    %v1838 = vpack.c.b16 %v1767, %v1766
    %v1839 = vpack.c.b16 %v1769, %v1768
    %v1840 = vpack.c.b16 %v1771, %v1770
    %v1841 = vpack.c.b16 %v1773, %v1772
    %v1842 = vpack.c.b16 %v1775, %v1774
    %v1843 = vpack.c.b16 %v1777, %v1776
    %v1844 = vpack.c.b16 %v1779, %v1778
    %v1845 = vpack.c.b16 %v1781, %v1780
    %1910 = vst [vmem:[#allocation10] sm:$0xff] %v1782
    %1911 = vst [vmem:[#allocation10 + $0x8] sm:$0xff] %v1783
    %1912 = vst [vmem:[#allocation10 + $0x10] sm:$0xff] %v1784
    %1913 = vst [vmem:[#allocation10 + $0x18] sm:$0xff] %v1785
    %1914 = vst [vmem:[#allocation10 + $0x20] sm:$0xff] %v1786
    %1915 = vst [vmem:[#allocation10 + $0x28] sm:$0xff] %v1787
    %1916 = vst [vmem:[#allocation10 + $0x30] sm:$0xff] %v1788
    %1917 = vst [vmem:[#allocation10 + $0x38] sm:$0xff] %v1789
    %1918 = vst [vmem:[#allocation10 + $0x40] sm:$0xff] %v1790
    %1919 = vst [vmem:[#allocation10 + $0x48] sm:$0xff] %v1791
    %1920 = vst [vmem:[#allocation10 + $0x50] sm:$0xff] %v1792
    %1921 = vst [vmem:[#allocation10 + $0x58] sm:$0xff] %v1793
    %1922 = vst [vmem:[#allocation10 + $0x60] sm:$0xff] %v1794
    %1923 = vst [vmem:[#allocation10 + $0x68] sm:$0xff] %v1795
    %1924 = vst [vmem:[#allocation10 + $0x70] sm:$0xff] %v1796
    %1925 = vst [vmem:[#allocation10 + $0x78] sm:$0xff] %v1797
    %1926 = vst [vmem:[#allocation10 + $0x80] sm:$0xff] %v1798
    %1927 = vst [vmem:[#allocation10 + $0x88] sm:$0xff] %v1799
    %1928 = vst [vmem:[#allocation10 + $0x90] sm:$0xff] %v1800
    %1929 = vst [vmem:[#allocation10 + $0x98] sm:$0xff] %v1801
    %1930 = vst [vmem:[#allocation10 + $0xa0] sm:$0xff] %v1802
    %1931 = vst [vmem:[#allocation10 + $0xa8] sm:$0xff] %v1803
    %1932 = vst [vmem:[#allocation10 + $0xb0] sm:$0xff] %v1804
    %1933 = vst [vmem:[#allocation10 + $0xb8] sm:$0xff] %v1805
    %1934 = vst [vmem:[#allocation10 + $0xc0] sm:$0xff] %v1806
    %1935 = vst [vmem:[#allocation10 + $0xc8] sm:$0xff] %v1807
    %1936 = vst [vmem:[#allocation10 + $0xd0] sm:$0xff] %v1808
    %1937 = vst [vmem:[#allocation10 + $0xd8] sm:$0xff] %v1809
    %1938 = vst [vmem:[#allocation10 + $0xe0] sm:$0xff] %v1810
    %1939 = vst [vmem:[#allocation10 + $0xe8] sm:$0xff] %v1811
    %1940 = vst [vmem:[#allocation10 + $0xf0] sm:$0xff] %v1812
    %1941 = vst [vmem:[#allocation10 + $0xf8] sm:$0xff] %v1813
    %1942 = vst [vmem:[#allocation10 + $0x100] sm:$0xff] %v1814
    %1943 = vst [vmem:[#allocation10 + $0x108] sm:$0xff] %v1815
    %1944 = vst [vmem:[#allocation10 + $0x110] sm:$0xff] %v1816
    %1945 = vst [vmem:[#allocation10 + $0x118] sm:$0xff] %v1817
    %1946 = vst [vmem:[#allocation10 + $0x120] sm:$0xff] %v1818
    %1947 = vst [vmem:[#allocation10 + $0x128] sm:$0xff] %v1819
    %1948 = vst [vmem:[#allocation10 + $0x130] sm:$0xff] %v1820
    %1949 = vst [vmem:[#allocation10 + $0x138] sm:$0xff] %v1821
    %1950 = vst [vmem:[#allocation10 + $0x140] sm:$0xff] %v1822
    %1951 = vst [vmem:[#allocation10 + $0x148] sm:$0xff] %v1823
    %1952 = vst [vmem:[#allocation10 + $0x150] sm:$0xff] %v1824
    %1953 = vst [vmem:[#allocation10 + $0x158] sm:$0xff] %v1825
    %1954 = vst [vmem:[#allocation10 + $0x160] sm:$0xff] %v1826
    %1955 = vst [vmem:[#allocation10 + $0x168] sm:$0xff] %v1827
    %1956 = vst [vmem:[#allocation10 + $0x170] sm:$0xff] %v1828
    %1957 = vst [vmem:[#allocation10 + $0x178] sm:$0xff] %v1829
    %1958 = vst [vmem:[#allocation10 + $0x180] sm:$0xff] %v1830
    %1959 = vst [vmem:[#allocation10 + $0x188] sm:$0xff] %v1831
    %1960 = vst [vmem:[#allocation10 + $0x190] sm:$0xff] %v1832
    %1961 = vst [vmem:[#allocation10 + $0x198] sm:$0xff] %v1833
    %1962 = vst [vmem:[#allocation10 + $0x1a0] sm:$0xff] %v1834
    %1963 = vst [vmem:[#allocation10 + $0x1a8] sm:$0xff] %v1835
    %1964 = vst [vmem:[#allocation10 + $0x1b0] sm:$0xff] %v1836
    %1965 = vst [vmem:[#allocation10 + $0x1b8] sm:$0xff] %v1837
    %1966 = vst [vmem:[#allocation10 + $0x1c0] sm:$0xff] %v1838
    %1967 = vst [vmem:[#allocation10 + $0x1c8] sm:$0xff] %v1839
    %1968 = vst [vmem:[#allocation10 + $0x1d0] sm:$0xff] %v1840
    %1969 = vst [vmem:[#allocation10 + $0x1d8] sm:$0xff] %v1841
    %1970 = vst [vmem:[#allocation10 + $0x1e0] sm:$0xff] %v1842
    %1971 = vst [vmem:[#allocation10 + $0x1e8] sm:$0xff] %v1843
    %1972 = vst [vmem:[#allocation10 + $0x1f0] sm:$0xff] %v1844
    %1973 = vst [vmem:[#allocation10 + $0x1f8] sm:$0xff] %v1845
    // Predicated region
    $region34: #{tpu_custom_call.1} parent=1 // pred_check
      _
    $region35: #{tpu_custom_call.1} parent=1 // pred_check_branch
      %1975 = sbr.rel (0) target = $region37
    $region36: #{tpu_custom_call.1} parent=1 // pred_region
      %s1977 = ssub.s32 8192, 8192
      %1978 = vsyncadd [#allocation4], %s1977
      %s1979 = sshll.u32 [#allocation10], 4
      %s1980 = int_to_ptr.vmem [resolvable:$true] %s1979
      %1985 = dma.vmem_to_hbm [thread:$0]  %s1980, 8192, %s4, [#allocation4], 256, 256, 16
    $region37: #{tpu_custom_call.1} parent=1 // pred_fallthru
      _
    // Predicated region
    $region38: #{tpu_custom_call.1} parent=1 // pred_check
      _
    $region39: #{tpu_custom_call.1} parent=1 // pred_check_branch
      %1987 = sbr.rel (0) target = $region41
    $region40: #{tpu_custom_call.1} parent=1 // pred_region
      %1988 = dma.done [#allocation4], 8192
    $region41: #{tpu_custom_call.1} parent=1 // pred_fallthru
      _
    %1989 = vsyncpa [#allocation3], 1
    %1990 = vsyncpa [#allocation6], 1
    %1991 = vsyncpa [#allocation9], 1
    %1992 = vsyncpa [#allocation4], 1

</llo_original>
